<compile_context>
chip_gen: v7x
topology: tpu7x:2x2x1
jax: 0.10.0
libtpu: 0.0.40
codegen_flags: <defaults>
</compile_context>

<pallas_src>
import math

import jax
import jax.numpy as jnp
from jax.experimental import pallas as pl
from jax.experimental.pallas import tpu as pltpu


def _round_up(x, m):
    return (x + m - 1) // m * m


# ----------------------------------------------------------------------------
# Fused kernel: one (input_idx, batch_tile) grid cell = specific + shared MLP
# forward over one (tile_b, d_in) activation tile.
# ----------------------------------------------------------------------------
def _make_kernel(num_layers):
    def kernel(x_ref, *refs):
        spec_o_ref, sh_o_ref = refs[-2], refs[-1]
        wb = refs[:-2]
        x = x_ref[0]                      # (tile_b, d_in) bf16
        h_spec = x
        h_sh = x
        for layer in range(num_layers):
            w_s = wb[4 * layer][0]        # (d_l, d_{l+1}) bf16, slab picked by grid i
            b_s = wb[4 * layer + 1][0]    # (1, d_{l+1})   f32
            w_h = wb[4 * layer + 2][...]  # (d_l, d_{l+1}) bf16, shared (VMEM-resident)
            b_h = wb[4 * layer + 3][...]  # (1, d_{l+1})   f32
            h_spec = jnp.dot(h_spec.astype(w_s.dtype), w_s,
                             preferred_element_type=jnp.float32) + b_s
            h_sh = jnp.dot(h_sh.astype(w_h.dtype), w_h,
                           preferred_element_type=jnp.float32) + b_h
            if layer < num_layers - 1:
                h_spec = jnp.maximum(h_spec, 0.0)
                h_sh = jnp.maximum(h_sh, 0.0)
        spec_o_ref[0] = h_spec.astype(spec_o_ref.dtype)
        sh_o_ref[0] = h_sh.astype(sh_o_ref.dtype)

    return kernel


def fused_disentangle_forward(x2, spec_params, shared_params, dims, tile_b):
    """x2: (2, B_pad, d_in) bf16 = [e_T, e_S].
    spec_params:   [(W (2, d_l, d_{l+1}) bf16, b (2, 1, d_{l+1}) f32), ...]  (T, S stacked)
    shared_params: [(W (d_l, d_{l+1})    bf16, b (1, d_{l+1})    f32), ...]"""
    _, b_pad, d_in = x2.shape
    num_layers = len(spec_params)
    nbt = b_pad // tile_b

    x_map = lambda i, bt: (i, bt, 0)        # noqa: E731
    spec_map = lambda i, bt: (i, 0, 0)      # noqa: E731  (select T/S weight slab)
    shared_map = lambda i, bt: (0, 0)       # noqa: E731  (constant -> fetched once)

    in_specs = [pl.BlockSpec((1, tile_b, d_in), x_map)]
    flat_params = []
    for (w_s, b_s), (w_h, b_h) in zip(spec_params, shared_params):
        in_specs.append(pl.BlockSpec((1,) + w_s.shape[1:], spec_map))
        in_specs.append(pl.BlockSpec((1,) + b_s.shape[1:], spec_map))
        in_specs.append(pl.BlockSpec(w_h.shape, shared_map))
        in_specs.append(pl.BlockSpec(b_h.shape, shared_map))
        flat_params.extend([w_s, b_s, w_h, b_h])

    out_specs = (pl.BlockSpec((1, tile_b, d_in), x_map),
                 pl.BlockSpec((1, tile_b, d_in), x_map))
    out_shape = (jax.ShapeDtypeStruct((2, b_pad, d_in), jnp.float32),
                 jax.ShapeDtypeStruct((2, b_pad, d_in), jnp.float32))

    # 4 logical chains (2 inputs x {specific, shared}) over b_pad rows.
    flops = 4 * b_pad * sum(2 * dims[l] * dims[l + 1] for l in range(num_layers))
    bytes_accessed = (
        x2.size * x2.dtype.itemsize                       # bf16 inputs
        + 2 * 2 * b_pad * d_in * 4                        # two f32 outputs
        + sum(w.size * w.dtype.itemsize + b.size * b.dtype.itemsize
              for (w, b) in spec_params)
        + sum(w.size * w.dtype.itemsize + b.size * b.dtype.itemsize
              for (w, b) in shared_params)
    )

    return pl.pallas_call(
        _make_kernel(num_layers),
        out_shape=out_shape,
        grid=(2, nbt),
        in_specs=in_specs,
        out_specs=out_specs,
        # Every (input, batch_tile) cell is independent -> both axes parallel
        # (lets v7x's two TensorCores split the grid; no-op on v5e/v6e).
        compiler_params=pltpu.CompilerParams(
            dimension_semantics=("parallel", "parallel")),
        cost_estimate=pl.CostEstimate(
            flops=flops, transcendentals=0, bytes_accessed=bytes_accessed),
    )(x2, *flat_params)


# ----------------------------------------------------------------------------
# Parameter construction (deterministic, PyTorch-Linear-like init)
# ----------------------------------------------------------------------------
def _init_extractor_params(key, d_in, hidden_dims):
    """Emulates nn.Linear default init (uniform +-1/sqrt(fan_in)); f32 masters."""
    dims = [d_in] + list(hidden_dims) + [d_in]
    params = []
    for i in range(len(dims) - 1):
        fan_in, fan_out = dims[i], dims[i + 1]
        key, kw, kb = jax.random.split(key, 3)
        bound = 1.0 / math.sqrt(fan_in)
        # PyTorch stores W as (out, in); pre-transpose to (in, out) for x @ W.
        w = jax.random.uniform(kw, (fan_out, fan_in), jnp.float32, -bound, bound)
        b = jax.random.uniform(kb, (fan_out,), jnp.float32, -bound, bound)
        params.append((w.T, b.reshape(1, fan_out)))
    return params


class FeatureDisentanglement:
    """JAX/Pallas re-implementation of the PyTorch FeatureDisentanglement module."""

    def __init__(self, d_in=128, hidden_dims=None, disentangle_dim=64, seed=0):
        del disentangle_dim  # unused in the PyTorch forward as well
        if hidden_dims is None:
            hidden_dims = [256, 128]
        self.d_in = d_in
        self.dims = [d_in] + list(hidden_dims) + [d_in]

        key = jax.random.PRNGKey(seed)
        k_t, k_s, k_sh = jax.random.split(key, 3)
        # f32 master params (also used by the pure-JAX reference)
        self.params_specific_T = _init_extractor_params(k_t, d_in, hidden_dims)
        self.params_specific_S = _init_extractor_params(k_s, d_in, hidden_dims)
        self.params_shared = _init_extractor_params(k_sh, d_in, hidden_dims)

        # Kernel params:
        #  specific: per layer W (2, in, out) bf16 [T, S] and b (2, 1, out) f32
        #  shared:   per layer W (in, out)    bf16       and b (1, out)    f32
        self.spec_params = []
        self.shared_params = []
        for layer in range(len(self.dims) - 1):
            w_s = jnp.stack([self.params_specific_T[layer][0],
                             self.params_specific_S[layer][0]]).astype(jnp.bfloat16)
            b_s = jnp.stack([self.params_specific_T[layer][1],
                             self.params_specific_S[layer][1]]).astype(jnp.float32)
            self.spec_params.append((w_s, b_s))
            self.shared_params.append(
                (self.params_shared[layer][0].astype(jnp.bfloat16),
                 self.params_shared[layer][1].astype(jnp.float32)))

    def __call__(self, e_T, e_S):
        assert e_T.shape[1] == e_S.shape[1], "Source/Target feature dimensions must match"
        assert e_T.shape[1] == self.d_in
        batch = e_T.shape[0]

        # Sublane-aligned batch tile, up to 1024 rows per tile (double-buffered
        # bf16-in / f32-out tiles stay well under every generation's scoped VMEM).
        tile_b = min(_round_up(max(batch, 1), 8), 1024)
        b_pad = _round_up(max(batch, 1), tile_b)

        def pad(x):
            # Pad then cast to bf16: halves input DMA bytes; the kernel cast to
            # bf16 before the first matmul anyway, so numerics are unchanged.
            return jnp.pad(x.astype(jnp.float32),
                           ((0, b_pad - batch), (0, 0))).astype(jnp.bfloat16)

        x2 = jnp.stack([pad(e_T), pad(e_S)], axis=0)   # (2, B_pad, d_in)

        spec_out, sh_out = fused_disentangle_forward(
            x2, self.spec_params, self.shared_params, self.dims, tile_b)

        h_specific_T = spec_out[0, :batch]
        h_specific_S = spec_out[1, :batch]
        h_shared_T = sh_out[0, :batch]
        h_shared_S = sh_out[1, :batch]
        return h_specific_T, h_specific_S, h_shared_T, h_shared_S


# ----------------------------------------------------------------------------
# Reference (pure JAX, f32) for a sanity check
# ----------------------------------------------------------------------------
def _mlp_ref(x, params):
    h = x
    for i, (w, b) in enumerate(params):
        h = h @ w + b
        if i < len(params) - 1:
            h = jnp.maximum(h, 0.0)
    return h


if __name__ == "__main__":
    d_in = 128
    hidden_dims = [256, 128]
    batch = 8

    key = jax.random.PRNGKey(0)
    k_t, k_s = jax.random.split(key)
    e_T = jax.random.normal(k_t, (batch, d_in), dtype=jnp.float32)
    e_S = jax.random.normal(k_s, (batch, d_in), dtype=jnp.float32)

    model = FeatureDisentanglement(d_in=d_in, hidden_dims=hidden_dims, seed=0)

    outs = model(e_T, e_S)
    outs = jax.block_until_ready(outs)
    h_specific_T, h_specific_S, h_shared_T, h_shared_S = outs

    # Sanity check against the pure-JAX f32 reference (bf16 matmuls -> loose tol).
    refs = (
        _mlp_ref(e_T, model.params_specific_T),
        _mlp_ref(e_S, model.params_specific_S),
        _mlp_ref(e_T, model.params_shared),
        _mlp_ref(e_S, model.params_shared),
    )
    for out, ref in zip(outs, refs):
        assert out.shape == (batch, d_in)
        assert jnp.allclose(out, ref, atol=5e-2, rtol=5e-2), (
            float(jnp.max(jnp.abs(out - ref))))

    print("KERNEL_OK")
</pallas_src>

<mosaic_0001>
module attributes {stable_mosaic.version = 11 : i64} {
  func.func @kernel(%arg0: i32, %arg1: i32, %arg2: memref<1x8x128xbf16, #tpu.memory_space<vmem>>, %arg3: memref<1x128x256xbf16, #tpu.memory_space<vmem>>, %arg4: memref<1x1x256xf32, #tpu.memory_space<vmem>>, %arg5: memref<128x256xbf16, #tpu.memory_space<vmem>>, %arg6: memref<1x256xf32, #tpu.memory_space<vmem>>, %arg7: memref<1x256x128xbf16, #tpu.memory_space<vmem>>, %arg8: memref<1x1x128xf32, #tpu.memory_space<vmem>>, %arg9: memref<256x128xbf16, #tpu.memory_space<vmem>>, %arg10: memref<1x128xf32, #tpu.memory_space<vmem>>, %arg11: memref<1x128x128xbf16, #tpu.memory_space<vmem>>, %arg12: memref<1x1x128xf32, #tpu.memory_space<vmem>>, %arg13: memref<128x128xbf16, #tpu.memory_space<vmem>>, %arg14: memref<1x128xf32, #tpu.memory_space<vmem>>, %arg15: memref<1x8x128xf32, #tpu.memory_space<vmem>>, %arg16: memref<1x8x128xf32, #tpu.memory_space<vmem>>) attributes {dimension_semantics = [#tpu.dimension_semantics<parallel>, #tpu.dimension_semantics<parallel>], iteration_bounds = array<i64: 2, 1>, scalar_prefetch = 0 : i64, scratch_operands = 0 : i64, tpu.core_type = #tpu.core_type<tc>, window_params = [{transform_indices = @transform_0, window_bounds = array<i64: 1, 8, 128>}, {transform_indices = @transform_1, window_bounds = array<i64: 1, 128, 256>}, {transform_indices = @transform_2, window_bounds = array<i64: 1, 1, 256>}, {pipeline_mode = #tpu.pipeline_mode<synchronous>, transform_indices = @transform_3, window_bounds = array<i64: 128, 256>}, {pipeline_mode = #tpu.pipeline_mode<synchronous>, transform_indices = @transform_4, window_bounds = array<i64: 1, 256>}, {transform_indices = @transform_5, window_bounds = array<i64: 1, 256, 128>}, {transform_indices = @transform_6, window_bounds = array<i64: 1, 1, 128>}, {pipeline_mode = #tpu.pipeline_mode<synchronous>, transform_indices = @transform_7, window_bounds = array<i64: 256, 128>}, {pipeline_mode = #tpu.pipeline_mode<synchronous>, transform_indices = @transform_8, window_bounds = array<i64: 1, 128>}, {transform_indices = @transform_9, window_bounds = array<i64: 1, 128, 128>}, {transform_indices = @transform_10, window_bounds = array<i64: 1, 1, 128>}, {pipeline_mode = #tpu.pipeline_mode<synchronous>, transform_indices = @transform_11, window_bounds = array<i64: 128, 128>}, {pipeline_mode = #tpu.pipeline_mode<synchronous>, transform_indices = @transform_12, window_bounds = array<i64: 1, 128>}, {transform_indices = @transform_13, window_bounds = array<i64: 1, 8, 128>}, {transform_indices = @transform_14, window_bounds = array<i64: 1, 8, 128>}]} {
    %c0 = arith.constant 0 : index
    %c0_0 = arith.constant 0 : index
    %c0_1 = arith.constant 0 : index
    %0 = vector.load %arg2[%c0, %c0_0, %c0_1] : memref<1x8x128xbf16, #tpu.memory_space<vmem>>, vector<1x8x128xbf16>
    %1 = vector.shape_cast %0 : vector<1x8x128xbf16> to vector<8x128xbf16>
    %c0_2 = arith.constant 0 : index
    %c0_3 = arith.constant 0 : index
    %c0_4 = arith.constant 0 : index
    %2 = vector.load %arg3[%c0_2, %c0_3, %c0_4] : memref<1x128x256xbf16, #tpu.memory_space<vmem>>, vector<1x128x256xbf16>
    %3 = vector.shape_cast %2 : vector<1x128x256xbf16> to vector<128x256xbf16>
    %c0_5 = arith.constant 0 : index
    %c0_6 = arith.constant 0 : index
    %c0_7 = arith.constant 0 : index
    %4 = vector.load %arg4[%c0_5, %c0_6, %c0_7] : memref<1x1x256xf32, #tpu.memory_space<vmem>>, vector<1x1x256xf32>
    %5 = vector.shape_cast %4 : vector<1x1x256xf32> to vector<1x256xf32>
    %c0_8 = arith.constant 0 : index
    %c0_9 = arith.constant 0 : index
    %6 = vector.load %arg5[%c0_8, %c0_9] : memref<128x256xbf16, #tpu.memory_space<vmem>>, vector<128x256xbf16>
    %c0_10 = arith.constant 0 : index
    %c0_11 = arith.constant 0 : index
    %7 = vector.load %arg6[%c0_10, %c0_11] : memref<1x256xf32, #tpu.memory_space<vmem>>, vector<1x256xf32>
    %cst = arith.constant dense<0.000000e+00> : vector<8x256xf32>
    %8 = tpu.matmul %1, %3, %cst {dimension_numbers = #tpu.dot_dimension_numbers<[1], [0], [0], [1], [0, 0, 1, 1], [], []>} : vector<8x128xbf16>, vector<128x256xbf16>, vector<8x256xf32> -> vector<8x256xf32>
    %9 = vector.broadcast %5 : vector<1x256xf32> to vector<8x256xf32>
    %10 = arith.addf %8, %9 : vector<8x256xf32>
    %cst_12 = arith.constant dense<0.000000e+00> : vector<8x256xf32>
    %11 = tpu.matmul %1, %6, %cst_12 {dimension_numbers = #tpu.dot_dimension_numbers<[1], [0], [0], [1], [0, 0, 1, 1], [], []>} : vector<8x128xbf16>, vector<128x256xbf16>, vector<8x256xf32> -> vector<8x256xf32>
    %12 = vector.broadcast %7 : vector<1x256xf32> to vector<8x256xf32>
    %13 = arith.addf %11, %12 : vector<8x256xf32>
    %cst_13 = arith.constant 0.000000e+00 : f32
    %14 = vector.broadcast %cst_13 : f32 to vector<8x256xf32>
    %15 = arith.maximumf %10, %14 : vector<8x256xf32>
    %cst_14 = arith.constant 0.000000e+00 : f32
    %16 = vector.broadcast %cst_14 : f32 to vector<8x256xf32>
    %17 = arith.maximumf %13, %16 : vector<8x256xf32>
    %c0_15 = arith.constant 0 : index
    %c0_16 = arith.constant 0 : index
    %c0_17 = arith.constant 0 : index
    %18 = vector.load %arg7[%c0_15, %c0_16, %c0_17] : memref<1x256x128xbf16, #tpu.memory_space<vmem>>, vector<1x256x128xbf16>
    %19 = vector.shape_cast %18 : vector<1x256x128xbf16> to vector<256x128xbf16>
    %c0_18 = arith.constant 0 : index
    %c0_19 = arith.constant 0 : index
    %c0_20 = arith.constant 0 : index
    %20 = vector.load %arg8[%c0_18, %c0_19, %c0_20] : memref<1x1x128xf32, #tpu.memory_space<vmem>>, vector<1x1x128xf32>
    %21 = vector.shape_cast %20 : vector<1x1x128xf32> to vector<1x128xf32>
    %c0_21 = arith.constant 0 : index
    %c0_22 = arith.constant 0 : index
    %22 = vector.load %arg9[%c0_21, %c0_22] : memref<256x128xbf16, #tpu.memory_space<vmem>>, vector<256x128xbf16>
    %c0_23 = arith.constant 0 : index
    %c0_24 = arith.constant 0 : index
    %23 = vector.load %arg10[%c0_23, %c0_24] : memref<1x128xf32, #tpu.memory_space<vmem>>, vector<1x128xf32>
    %24 = arith.truncf %15 : vector<8x256xf32> to vector<8x256xbf16>
    %cst_25 = arith.constant dense<0.000000e+00> : vector<8x128xf32>
    %25 = tpu.matmul %24, %19, %cst_25 {dimension_numbers = #tpu.dot_dimension_numbers<[1], [0], [0], [1], [0, 0, 1, 1], [], []>} : vector<8x256xbf16>, vector<256x128xbf16>, vector<8x128xf32> -> vector<8x128xf32>
    %26 = vector.broadcast %21 : vector<1x128xf32> to vector<8x128xf32>
    %27 = arith.addf %25, %26 : vector<8x128xf32>
    %28 = arith.truncf %17 : vector<8x256xf32> to vector<8x256xbf16>
    %cst_26 = arith.constant dense<0.000000e+00> : vector<8x128xf32>
    %29 = tpu.matmul %28, %22, %cst_26 {dimension_numbers = #tpu.dot_dimension_numbers<[1], [0], [0], [1], [0, 0, 1, 1], [], []>} : vector<8x256xbf16>, vector<256x128xbf16>, vector<8x128xf32> -> vector<8x128xf32>
    %30 = vector.broadcast %23 : vector<1x128xf32> to vector<8x128xf32>
    %31 = arith.addf %29, %30 : vector<8x128xf32>
    %cst_27 = arith.constant 0.000000e+00 : f32
    %32 = vector.broadcast %cst_27 : f32 to vector<8x128xf32>
    %33 = arith.maximumf %27, %32 : vector<8x128xf32>
    %cst_28 = arith.constant 0.000000e+00 : f32
    %34 = vector.broadcast %cst_28 : f32 to vector<8x128xf32>
    %35 = arith.maximumf %31, %34 : vector<8x128xf32>
    %c0_29 = arith.constant 0 : index
    %c0_30 = arith.constant 0 : index
    %c0_31 = arith.constant 0 : index
    %36 = vector.load %arg11[%c0_29, %c0_30, %c0_31] : memref<1x128x128xbf16, #tpu.memory_space<vmem>>, vector<1x128x128xbf16>
    %37 = vector.shape_cast %36 : vector<1x128x128xbf16> to vector<128x128xbf16>
    %c0_32 = arith.constant 0 : index
    %c0_33 = arith.constant 0 : index
    %c0_34 = arith.constant 0 : index
    %38 = vector.load %arg12[%c0_32, %c0_33, %c0_34] : memref<1x1x128xf32, #tpu.memory_space<vmem>>, vector<1x1x128xf32>
    %39 = vector.shape_cast %38 : vector<1x1x128xf32> to vector<1x128xf32>
    %c0_35 = arith.constant 0 : index
    %c0_36 = arith.constant 0 : index
    %40 = vector.load %arg13[%c0_35, %c0_36] : memref<128x128xbf16, #tpu.memory_space<vmem>>, vector<128x128xbf16>
    %c0_37 = arith.constant 0 : index
    %c0_38 = arith.constant 0 : index
    %41 = vector.load %arg14[%c0_37, %c0_38] : memref<1x128xf32, #tpu.memory_space<vmem>>, vector<1x128xf32>
    %42 = arith.truncf %33 : vector<8x128xf32> to vector<8x128xbf16>
    %cst_39 = arith.constant dense<0.000000e+00> : vector<8x128xf32>
    %43 = tpu.matmul %42, %37, %cst_39 {dimension_numbers = #tpu.dot_dimension_numbers<[1], [0], [0], [1], [0, 0, 1, 1], [], []>} : vector<8x128xbf16>, vector<128x128xbf16>, vector<8x128xf32> -> vector<8x128xf32>
    %44 = vector.broadcast %39 : vector<1x128xf32> to vector<8x128xf32>
    %45 = arith.addf %43, %44 : vector<8x128xf32>
    %46 = arith.truncf %35 : vector<8x128xf32> to vector<8x128xbf16>
    %cst_40 = arith.constant dense<0.000000e+00> : vector<8x128xf32>
    %47 = tpu.matmul %46, %40, %cst_40 {dimension_numbers = #tpu.dot_dimension_numbers<[1], [0], [0], [1], [0, 0, 1, 1], [], []>} : vector<8x128xbf16>, vector<128x128xbf16>, vector<8x128xf32> -> vector<8x128xf32>
    %48 = vector.broadcast %41 : vector<1x128xf32> to vector<8x128xf32>
    %49 = arith.addf %47, %48 : vector<8x128xf32>
    %c0_41 = arith.constant 0 : index
    %c0_42 = arith.constant 0 : index
    %c0_43 = arith.constant 0 : index
    %50 = vector.load %arg15[%c0_41, %c0_42, %c0_43] : memref<1x8x128xf32, #tpu.memory_space<vmem>>, vector<1x8x128xf32>
    %51 = vector.shape_cast %50 : vector<1x8x128xf32> to vector<8x128xf32>
    %52 = vector.shape_cast %45 : vector<8x128xf32> to vector<1x8x128xf32>
    tpu.vector_store %arg15[%c0_41, %c0_42, %c0_43], %52 {strides = array<i32>} : memref<1x8x128xf32, #tpu.memory_space<vmem>>, vector<1x8x128xf32>,
    %c0_44 = arith.constant 0 : index
    %c0_45 = arith.constant 0 : index
    %c0_46 = arith.constant 0 : index
    %53 = vector.load %arg16[%c0_44, %c0_45, %c0_46] : memref<1x8x128xf32, #tpu.memory_space<vmem>>, vector<1x8x128xf32>
    %54 = vector.shape_cast %53 : vector<1x8x128xf32> to vector<8x128xf32>
    %55 = vector.shape_cast %49 : vector<8x128xf32> to vector<1x8x128xf32>
    tpu.vector_store %arg16[%c0_44, %c0_45, %c0_46], %55 {strides = array<i32>} : memref<1x8x128xf32, #tpu.memory_space<vmem>>, vector<1x8x128xf32>,
    return
  }
  func.func @transform_0(%arg0: i32, %arg1: i32) -> (i32, i32, i32) {
    %c0_i32 = arith.constant 0 : i32
    %c0_i32_0 = arith.constant 0 : i32
    return %arg0, %arg1, %c0_i32 : i32, i32, i32
  }
  func.func @transform_1(%arg0: i32, %arg1: i32) -> (i32, i32, i32) {
    %c0_i32 = arith.constant 0 : i32
    %c0_i32_0 = arith.constant 0 : i32
    %c0_i32_1 = arith.constant 0 : i32
    return %arg0, %c0_i32, %c0_i32_0 : i32, i32, i32
  }
  func.func @transform_2(%arg0: i32, %arg1: i32) -> (i32, i32, i32) {
    %c0_i32 = arith.constant 0 : i32
    %c0_i32_0 = arith.constant 0 : i32
    %c0_i32_1 = arith.constant 0 : i32
    return %arg0, %c0_i32, %c0_i32_0 : i32, i32, i32
  }
  func.func @transform_3(%arg0: i32, %arg1: i32) -> (i32, i32) {
    %c0_i32 = arith.constant 0 : i32
    %c0_i32_0 = arith.constant 0 : i32
    %c0_i32_1 = arith.constant 0 : i32
    return %c0_i32, %c0_i32_0 : i32, i32
  }
  func.func @transform_4(%arg0: i32, %arg1: i32) -> (i32, i32) {
    %c0_i32 = arith.constant 0 : i32
    %c0_i32_0 = arith.constant 0 : i32
    %c0_i32_1 = arith.constant 0 : i32
    return %c0_i32, %c0_i32_0 : i32, i32
  }
  func.func @transform_5(%arg0: i32, %arg1: i32) -> (i32, i32, i32) {
    %c0_i32 = arith.constant 0 : i32
    %c0_i32_0 = arith.constant 0 : i32
    %c0_i32_1 = arith.constant 0 : i32
    return %arg0, %c0_i32, %c0_i32_0 : i32, i32, i32
  }
  func.func @transform_6(%arg0: i32, %arg1: i32) -> (i32, i32, i32) {
    %c0_i32 = arith.constant 0 : i32
    %c0_i32_0 = arith.constant 0 : i32
    %c0_i32_1 = arith.constant 0 : i32
    return %arg0, %c0_i32, %c0_i32_0 : i32, i32, i32
  }
  func.func @transform_7(%arg0: i32, %arg1: i32) -> (i32, i32) {
    %c0_i32 = arith.constant 0 : i32
    %c0_i32_0 = arith.constant 0 : i32
    %c0_i32_1 = arith.constant 0 : i32
    return %c0_i32, %c0_i32_0 : i32, i32
  }
  func.func @transform_8(%arg0: i32, %arg1: i32) -> (i32, i32) {
    %c0_i32 = arith.constant 0 : i32
    %c0_i32_0 = arith.constant 0 : i32
    %c0_i32_1 = arith.constant 0 : i32
    return %c0_i32, %c0_i32_0 : i32, i32
  }
  func.func @transform_9(%arg0: i32, %arg1: i32) -> (i32, i32, i32) {
    %c0_i32 = arith.constant 0 : i32
    %c0_i32_0 = arith.constant 0 : i32
    %c0_i32_1 = arith.constant 0 : i32
    return %arg0, %c0_i32, %c0_i32_0 : i32, i32, i32
  }
  func.func @transform_10(%arg0: i32, %arg1: i32) -> (i32, i32, i32) {
    %c0_i32 = arith.constant 0 : i32
    %c0_i32_0 = arith.constant 0 : i32
    %c0_i32_1 = arith.constant 0 : i32
    return %arg0, %c0_i32, %c0_i32_0 : i32, i32, i32
  }
  func.func @transform_11(%arg0: i32, %arg1: i32) -> (i32, i32) {
    %c0_i32 = arith.constant 0 : i32
    %c0_i32_0 = arith.constant 0 : i32
    %c0_i32_1 = arith.constant 0 : i32
    return %c0_i32, %c0_i32_0 : i32, i32
  }
  func.func @transform_12(%arg0: i32, %arg1: i32) -> (i32, i32) {
    %c0_i32 = arith.constant 0 : i32
    %c0_i32_0 = arith.constant 0 : i32
    %c0_i32_1 = arith.constant 0 : i32
    return %c0_i32, %c0_i32_0 : i32, i32
  }
  func.func @transform_13(%arg0: i32, %arg1: i32) -> (i32, i32, i32) {
    %c0_i32 = arith.constant 0 : i32
    %c0_i32_0 = arith.constant 0 : i32
    return %arg0, %arg1, %c0_i32 : i32, i32, i32
  }
  func.func @transform_14(%arg0: i32, %arg1: i32) -> (i32, i32, i32) {
    %c0_i32 = arith.constant 0 : i32
    %c0_i32_0 = arith.constant 0 : i32
    return %arg0, %arg1, %c0_i32 : i32, i32, i32
  }
}

</mosaic_0001>

<llo_original>
// kernel: tpu_custom_call.1
$region0: #{tpu_custom_call.1}
  #allocation0 [shape = 'u32[]', space=smem, size = 0x4, offset = 0x4, fixed_abs, tag = 'smem constant byte address 0x4 - core index']
  #allocation1 [shape = 'u32[144,128]{1,0:T(1,128)}', space=vmem, size = 0x12000, scoped, tag = 'internal scratch']
  %s0 = inlined_call_operand.hbm [shape: bf16[2,8,128], index: 0, kind: input, shape index: {}]
  %s1 = inlined_call_operand.hbm [shape: bf16[2,128,256], index: 1, kind: input, shape index: {}]
  %s2 = inlined_call_operand.vmem [shape: f32[2,1,256], index: 2, kind: input, shape index: {}]
  %s3 = inlined_call_operand.hbm [shape: bf16[128,256], index: 3, kind: input, shape index: {}]
  %s4 = inlined_call_operand.vmem [shape: f32[1,256], index: 4, kind: input, shape index: {}]
  %s5 = inlined_call_operand.hbm [shape: bf16[2,256,128], index: 5, kind: input, shape index: {}]
  %s6 = inlined_call_operand.vmem [shape: f32[2,1,128], index: 6, kind: input, shape index: {}]
  %s7 = inlined_call_operand.hbm [shape: bf16[256,128], index: 7, kind: input, shape index: {}]
  %s8 = inlined_call_operand.vmem [shape: f32[1,128], index: 8, kind: input, shape index: {}]
  %s9 = inlined_call_operand.hbm [shape: bf16[2,128,128], index: 9, kind: input, shape index: {}]
  %s10 = inlined_call_operand.vmem [shape: f32[2,1,128], index: 10, kind: input, shape index: {}]
  %s11 = inlined_call_operand.hbm [shape: bf16[128,128], index: 11, kind: input, shape index: {}]
  %s12 = inlined_call_operand.vmem [shape: f32[1,128], index: 12, kind: input, shape index: {}]
  %s13 = inlined_call_operand.hbm [shape: f32[2,8,128], index: 13, kind: output, shape index: {0}]
  %s14 = inlined_call_operand.hbm [shape: f32[2,8,128], index: 14, kind: output, shape index: {1}]
  %15 = xla_tuple %s13, %s14
  %s16 = sld [smem:[#allocation0]]
  $region121: #{tpu_custom_call.1} parent=0
    _
  %s18 = ssub.s32 1, %s16
  %s19 = scalar_select 0, %s18, %s16
  $region1: #{tpu_custom_call.1} parent=0
    #allocation2 [shape = 'u8[4096]{0}', space=vmem, size = 0x1000, scoped, tag = 'input window, operand 0']
    #allocation3 [shape = 's32[2]{0}', space=sflag, size = 0x8, scoped, tag = 'scoped memory for tpu_custom_call.1']
    #allocation4 [shape = 's32[2]{0}', space=sflag, size = 0x8, scoped, tag = 'scoped memory for tpu_custom_call.1']
    #allocation5 [shape = 'u8[131072]{0}', space=vmem, size = 0x20000, scoped, tag = 'input window, operand 1']
    #allocation6 [shape = 's32[2]{0}', space=sflag, size = 0x8, scoped, tag = 'scoped memory for tpu_custom_call.1']
    #allocation7 [shape = 'u8[65536]{0}', space=vmem, size = 0x10000, scoped, tag = 'input window, operand 3, single buffered']
    #allocation8 [shape = 'u8[131072]{0}', space=vmem, size = 0x20000, scoped, tag = 'input window, operand 5']
    #allocation9 [shape = 's32[2]{0}', space=sflag, size = 0x8, scoped, tag = 'scoped memory for tpu_custom_call.1']
    #allocation10 [shape = 'u8[65536]{0}', space=vmem, size = 0x10000, scoped, tag = 'input window, operand 7, single buffered']
    #allocation11 [shape = 'u8[65536]{0}', space=vmem, size = 0x10000, scoped, tag = 'input window, operand 9']
    #allocation12 [shape = 's32[2]{0}', space=sflag, size = 0x8, scoped, tag = 'scoped memory for tpu_custom_call.1']
    #allocation13 [shape = 'u8[32768]{0}', space=vmem, size = 0x8000, scoped, tag = 'input window, operand 11, single buffered']
    #allocation14 [shape = 'u8[8192]{0}', space=vmem, size = 0x2000, scoped, tag = 'output window, operand 0']
    #allocation15 [shape = 'u8[8192]{0}', space=vmem, size = 0x2000, scoped, tag = 'output window, operand 1']
    #allocation16 [shape = 's32[2]{0}', space=sflag, size = 0x8, scoped, tag = 'scoped memory for tpu_custom_call.1']
    %20 = vsyncpa [#allocation3], 0
    %s21 = scalar_lea.sflag [#allocation3], 1
    %22 = vsyncpa %s21, 0
    %23 = vsyncpa [#allocation6], 0
    %s24 = scalar_lea.sflag [#allocation6], 1
    %25 = vsyncpa %s24, 0
    %26 = vsyncpa [#allocation9], 0
    %s27 = scalar_lea.sflag [#allocation9], 1
    %28 = vsyncpa %s27, 0
    %29 = vsyncpa [#allocation12], 0
    %s30 = scalar_lea.sflag [#allocation12], 1
    %31 = vsyncpa %s30, 0
    %32 = vsyncpa [#allocation4], 0
    %s33 = scalar_lea.sflag [#allocation4], 1
    %34 = vsyncpa %s33, 0
    %35 = vsyncpa [#allocation16], 0
    %s36 = scalar_lea.sflag [#allocation16], 1
    %37 = vsyncpa %s36, 0
    loop: start=0, step=1, limit=4
    $region2: #{tpu_custom_call.1} parent=1 // loop_pre_header
      _
    $region3: #{tpu_custom_call.1} parent=1 // loop_header
      %s39 = sphi 0, %s43
      %p40 = scmp.ge.s32.totalorder %s39, 4
      %s46 = sphi 0, %s58
      %s47 = sphi 0, %s54
      %s48 = sphi 0, %s46
      %s49 = sphi 0, %s47
      %s50 = sphi 0, %s48
      %s51 = sphi 0, %s49
      %s63 = sphi 0, %s65
      %s66 = sphi 0, %s63
      %s67 = sphi 0, %s66
      %s83 = sphi 0, %s67
      %s89 = sphi 0, %s91
      %s92 = sphi 0, %s89
      %s93 = sphi 0, %s92
      %s109 = sphi 0, %s93
      %s115 = sphi 0, %s117
      %s118 = sphi 0, %s115
      %s119 = sphi 0, %s118
      %s135 = sphi 0, %s119
      %s139 = sphi 0, %s139
      %s141 = sphi 0, %s139
      %s142 = sphi 0, %s141
      %s156 = sphi 0, %s142
      %s160 = sphi 0, %s160
      %s162 = sphi 0, %s160
      %s163 = sphi 0, %s162
      %s177 = sphi 0, %s163
      %s183 = sphi 0, %s185
      %s186 = sphi 0, %s183
      %s187 = sphi 0, %s186
      %s203 = sphi 0, %s187
      %s209 = sphi 0, %s211
      %s212 = sphi 0, %s209
      %s213 = sphi 0, %s212
      %s229 = sphi 0, %s213
      %s233 = sphi 0, %s233
      %s235 = sphi 0, %s233
      %s236 = sphi 0, %s235
      %s250 = sphi 0, %s236
      %s254 = sphi 0, %s254
      %s256 = sphi 0, %s254
      %s257 = sphi 0, %s256
      %s271 = sphi 0, %s257
      %s277 = sphi 0, %s279
      %s280 = sphi 0, %s277
      %s281 = sphi 0, %s280
      %s297 = sphi 0, %s281
      %s303 = sphi 0, %s305
      %s306 = sphi 0, %s303
      %s307 = sphi 0, %s306
      %s323 = sphi 0, %s307
      %s327 = sphi 0, %s327
      %s329 = sphi 0, %s327
      %s330 = sphi 0, %s329
      %s344 = sphi 0, %s330
      %s348 = sphi 0, %s348
      %s350 = sphi 0, %s348
      %s351 = sphi 0, %s350
      %s365 = sphi 0, %s351
      %s373 = sphi 0, %s375
      %s376 = sphi 0, %s373
      %s377 = sphi 0, %s376
      %s393 = sphi 0, %s377
      %s401 = sphi 0, %s403
      %s404 = sphi 0, %s401
      %s405 = sphi 0, %s404
      %s421 = sphi 0, %s405
    $region4: #{tpu_custom_call.1} parent=1 // loop_header_branch
      %42 = sbr.rel (%p40) target = $region8
    $region5: #{tpu_custom_call.1} parent=1 // loop_body
      %s44 = ssub.s32 %s39, 1
      %s45 = ssub.s32 %s39, 2
      %s52 = sadd.s32 1, %s47
      %p53 = scmp.ge.s32.totalorder %s52, 1
      %s54 = scalar_select %p53, 0, %s52
      %s55 = sadd.s32 1, %s46
      %s56 = scalar_select %p53, %s55, %s46
      %p57 = scmp.ge.s32.totalorder %s56, 2
      %s58 = scalar_select %p57, 0, %s56
      %s59 = ssub.s32 %s46, %s58
      %s60 = ssub.s32 %s47, %s54
      %s61 = sor.u32 %s59, %s60
      %p62 = scmp.eq.s32.totalorder %s61, 0
      %s64 = sadd.s32 %s63, 1
      %s65 = scalar_select %p62, %s63, %s64
      %p68 = pneg %p62
      %p69 = scmp.eq.s32.totalorder %s39, 1
      %p70 = por %p68, %p69
      %p71 = scmp.ne.s32.totalorder %s63, %s66
      %p72 = scmp.eq.s32.totalorder %s39, 0
      %p73 = por %p71, %p72
      %p74 = scmp.ne.s32.totalorder %s63, %s66
      %p75 = scmp.eq.s32.totalorder %s44, 1
      %p76 = por %p74, %p75
      %p77 = scmp.ne.s32.totalorder %s66, %s67
      %p78 = scmp.eq.s32.totalorder %s44, 0
      %p79 = por %p77, %p78
      %p80 = scmp.ne.s32.totalorder %s66, %s67
      %p81 = scmp.eq.s32.totalorder %s45, 1
      %p82 = por %p80, %p81
      %p84 = scmp.ne.s32.totalorder %s67, %s83
      %p85 = scmp.eq.s32.totalorder %s45, 0
      %p86 = por %p84, %p85
      %s87 = ssub.s32 %s46, %s58
      %p88 = scmp.eq.s32.totalorder %s87, 0
      %s90 = sadd.s32 %s89, 1
      %s91 = scalar_select %p88, %s89, %s90
      %p94 = pneg %p88
      %p95 = scmp.eq.s32.totalorder %s39, 1
      %p96 = por %p94, %p95
      %p97 = scmp.ne.s32.totalorder %s89, %s92
      %p98 = scmp.eq.s32.totalorder %s39, 0
      %p99 = por %p97, %p98
      %p100 = scmp.ne.s32.totalorder %s89, %s92
      %p101 = scmp.eq.s32.totalorder %s44, 1
      %p102 = por %p100, %p101
      %p103 = scmp.ne.s32.totalorder %s92, %s93
      %p104 = scmp.eq.s32.totalorder %s44, 0
      %p105 = por %p103, %p104
      %p106 = scmp.ne.s32.totalorder %s92, %s93
      %p107 = scmp.eq.s32.totalorder %s45, 1
      %p108 = por %p106, %p107
      %p110 = scmp.ne.s32.totalorder %s93, %s109
      %p111 = scmp.eq.s32.totalorder %s45, 0
      %p112 = por %p110, %p111
      %s113 = ssub.s32 %s46, %s58
      %p114 = scmp.eq.s32.totalorder %s113, 0
      %s116 = sadd.s32 %s115, 1
      %s117 = scalar_select %p114, %s115, %s116
      %p120 = pneg %p114
      %p121 = scmp.eq.s32.totalorder %s39, 1
      %p122 = por %p120, %p121
      %p123 = scmp.ne.s32.totalorder %s115, %s118
      %p124 = scmp.eq.s32.totalorder %s39, 0
      %p125 = por %p123, %p124
      %p126 = scmp.ne.s32.totalorder %s115, %s118
      %p127 = scmp.eq.s32.totalorder %s44, 1
      %p128 = por %p126, %p127
      %p129 = scmp.ne.s32.totalorder %s118, %s119
      %p130 = scmp.eq.s32.totalorder %s44, 0
      %p131 = por %p129, %p130
      %p132 = scmp.ne.s32.totalorder %s118, %s119
      %p133 = scmp.eq.s32.totalorder %s45, 1
      %p134 = por %p132, %p133
      %p136 = scmp.ne.s32.totalorder %s119, %s135
      %p137 = scmp.eq.s32.totalorder %s45, 0
      %p138 = por %p136, %p137
      %s140 = sadd.s32 %s139, 1
      %p143 = scmp.eq.s32.totalorder %s39, 1
      %p144 = scmp.ne.s32.totalorder %s139, %s141
      %p145 = scmp.eq.s32.totalorder %s39, 0
      %p146 = por %p144, %p145
      %p147 = scmp.ne.s32.totalorder %s139, %s141
      %p148 = scmp.eq.s32.totalorder %s44, 1
      %p149 = por %p147, %p148
      %p150 = scmp.ne.s32.totalorder %s141, %s142
      %p151 = scmp.eq.s32.totalorder %s44, 0
      %p152 = por %p150, %p151
      %p153 = scmp.ne.s32.totalorder %s141, %s142
      %p154 = scmp.eq.s32.totalorder %s45, 1
      %p155 = por %p153, %p154
      %p157 = scmp.ne.s32.totalorder %s142, %s156
      %p158 = scmp.eq.s32.totalorder %s45, 0
      %p159 = por %p157, %p158
      %s161 = sadd.s32 %s160, 1
      %p164 = scmp.eq.s32.totalorder %s39, 1
      %p165 = scmp.ne.s32.totalorder %s160, %s162
      %p166 = scmp.eq.s32.totalorder %s39, 0
      %p167 = por %p165, %p166
      %p168 = scmp.ne.s32.totalorder %s160, %s162
      %p169 = scmp.eq.s32.totalorder %s44, 1
      %p170 = por %p168, %p169
      %p171 = scmp.ne.s32.totalorder %s162, %s163
      %p172 = scmp.eq.s32.totalorder %s44, 0
      %p173 = por %p171, %p172
      %p174 = scmp.ne.s32.totalorder %s162, %s163
      %p175 = scmp.eq.s32.totalorder %s45, 1
      %p176 = por %p174, %p175
      %p178 = scmp.ne.s32.totalorder %s163, %s177
      %p179 = scmp.eq.s32.totalorder %s45, 0
      %p180 = por %p178, %p179
      %s181 = ssub.s32 %s46, %s58
      %p182 = scmp.eq.s32.totalorder %s181, 0
      %s184 = sadd.s32 %s183, 1
      %s185 = scalar_select %p182, %s183, %s184
      %p188 = pneg %p182
      %p189 = scmp.eq.s32.totalorder %s39, 1
      %p190 = por %p188, %p189
      %p191 = scmp.ne.s32.totalorder %s183, %s186
      %p192 = scmp.eq.s32.totalorder %s39, 0
      %p193 = por %p191, %p192
      %p194 = scmp.ne.s32.totalorder %s183, %s186
      %p195 = scmp.eq.s32.totalorder %s44, 1
      %p196 = por %p194, %p195
      %p197 = scmp.ne.s32.totalorder %s186, %s187
      %p198 = scmp.eq.s32.totalorder %s44, 0
      %p199 = por %p197, %p198
      %p200 = scmp.ne.s32.totalorder %s186, %s187
      %p201 = scmp.eq.s32.totalorder %s45, 1
      %p202 = por %p200, %p201
      %p204 = scmp.ne.s32.totalorder %s187, %s203
      %p205 = scmp.eq.s32.totalorder %s45, 0
      %p206 = por %p204, %p205
      %s207 = ssub.s32 %s46, %s58
      %p208 = scmp.eq.s32.totalorder %s207, 0
      %s210 = sadd.s32 %s209, 1
      %s211 = scalar_select %p208, %s209, %s210
      %p214 = pneg %p208
      %p215 = scmp.eq.s32.totalorder %s39, 1
      %p216 = por %p214, %p215
      %p217 = scmp.ne.s32.totalorder %s209, %s212
      %p218 = scmp.eq.s32.totalorder %s39, 0
      %p219 = por %p217, %p218
      %p220 = scmp.ne.s32.totalorder %s209, %s212
      %p221 = scmp.eq.s32.totalorder %s44, 1
      %p222 = por %p220, %p221
      %p223 = scmp.ne.s32.totalorder %s212, %s213
      %p224 = scmp.eq.s32.totalorder %s44, 0
      %p225 = por %p223, %p224
      %p226 = scmp.ne.s32.totalorder %s212, %s213
      %p227 = scmp.eq.s32.totalorder %s45, 1
      %p228 = por %p226, %p227
      %p230 = scmp.ne.s32.totalorder %s213, %s229
      %p231 = scmp.eq.s32.totalorder %s45, 0
      %p232 = por %p230, %p231
      %s234 = sadd.s32 %s233, 1
      %p237 = scmp.eq.s32.totalorder %s39, 1
      %p238 = scmp.ne.s32.totalorder %s233, %s235
      %p239 = scmp.eq.s32.totalorder %s39, 0
      %p240 = por %p238, %p239
      %p241 = scmp.ne.s32.totalorder %s233, %s235
      %p242 = scmp.eq.s32.totalorder %s44, 1
      %p243 = por %p241, %p242
      %p244 = scmp.ne.s32.totalorder %s235, %s236
      %p245 = scmp.eq.s32.totalorder %s44, 0
      %p246 = por %p244, %p245
      %p247 = scmp.ne.s32.totalorder %s235, %s236
      %p248 = scmp.eq.s32.totalorder %s45, 1
      %p249 = por %p247, %p248
      %p251 = scmp.ne.s32.totalorder %s236, %s250
      %p252 = scmp.eq.s32.totalorder %s45, 0
      %p253 = por %p251, %p252
      %s255 = sadd.s32 %s254, 1
      %p258 = scmp.eq.s32.totalorder %s39, 1
      %p259 = scmp.ne.s32.totalorder %s254, %s256
      %p260 = scmp.eq.s32.totalorder %s39, 0
      %p261 = por %p259, %p260
      %p262 = scmp.ne.s32.totalorder %s254, %s256
      %p263 = scmp.eq.s32.totalorder %s44, 1
      %p264 = por %p262, %p263
      %p265 = scmp.ne.s32.totalorder %s256, %s257
      %p266 = scmp.eq.s32.totalorder %s44, 0
      %p267 = por %p265, %p266
      %p268 = scmp.ne.s32.totalorder %s256, %s257
      %p269 = scmp.eq.s32.totalorder %s45, 1
      %p270 = por %p268, %p269
      %p272 = scmp.ne.s32.totalorder %s257, %s271
      %p273 = scmp.eq.s32.totalorder %s45, 0
      %p274 = por %p272, %p273
      %s275 = ssub.s32 %s46, %s58
      %p276 = scmp.eq.s32.totalorder %s275, 0
      %s278 = sadd.s32 %s277, 1
      %s279 = scalar_select %p276, %s277, %s278
      %p282 = pneg %p276
      %p283 = scmp.eq.s32.totalorder %s39, 1
      %p284 = por %p282, %p283
      %p285 = scmp.ne.s32.totalorder %s277, %s280
      %p286 = scmp.eq.s32.totalorder %s39, 0
      %p287 = por %p285, %p286
      %p288 = scmp.ne.s32.totalorder %s277, %s280
      %p289 = scmp.eq.s32.totalorder %s44, 1
      %p290 = por %p288, %p289
      %p291 = scmp.ne.s32.totalorder %s280, %s281
      %p292 = scmp.eq.s32.totalorder %s44, 0
      %p293 = por %p291, %p292
      %p294 = scmp.ne.s32.totalorder %s280, %s281
      %p295 = scmp.eq.s32.totalorder %s45, 1
      %p296 = por %p294, %p295
      %p298 = scmp.ne.s32.totalorder %s281, %s297
      %p299 = scmp.eq.s32.totalorder %s45, 0
      %p300 = por %p298, %p299
      %s301 = ssub.s32 %s46, %s58
      %p302 = scmp.eq.s32.totalorder %s301, 0
      %s304 = sadd.s32 %s303, 1
      %s305 = scalar_select %p302, %s303, %s304
      %p308 = pneg %p302
      %p309 = scmp.eq.s32.totalorder %s39, 1
      %p310 = por %p308, %p309
      %p311 = scmp.ne.s32.totalorder %s303, %s306
      %p312 = scmp.eq.s32.totalorder %s39, 0
      %p313 = por %p311, %p312
      %p314 = scmp.ne.s32.totalorder %s303, %s306
      %p315 = scmp.eq.s32.totalorder %s44, 1
      %p316 = por %p314, %p315
      %p317 = scmp.ne.s32.totalorder %s306, %s307
      %p318 = scmp.eq.s32.totalorder %s44, 0
      %p319 = por %p317, %p318
      %p320 = scmp.ne.s32.totalorder %s306, %s307
      %p321 = scmp.eq.s32.totalorder %s45, 1
      %p322 = por %p320, %p321
      %p324 = scmp.ne.s32.totalorder %s307, %s323
      %p325 = scmp.eq.s32.totalorder %s45, 0
      %p326 = por %p324, %p325
      %s328 = sadd.s32 %s327, 1
      %p331 = scmp.eq.s32.totalorder %s39, 1
      %p332 = scmp.ne.s32.totalorder %s327, %s329
      %p333 = scmp.eq.s32.totalorder %s39, 0
      %p334 = por %p332, %p333
      %p335 = scmp.ne.s32.totalorder %s327, %s329
      %p336 = scmp.eq.s32.totalorder %s44, 1
      %p337 = por %p335, %p336
      %p338 = scmp.ne.s32.totalorder %s329, %s330
      %p339 = scmp.eq.s32.totalorder %s44, 0
      %p340 = por %p338, %p339
      %p341 = scmp.ne.s32.totalorder %s329, %s330
      %p342 = scmp.eq.s32.totalorder %s45, 1
      %p343 = por %p341, %p342
      %p345 = scmp.ne.s32.totalorder %s330, %s344
      %p346 = scmp.eq.s32.totalorder %s45, 0
      %p347 = por %p345, %p346
      %s349 = sadd.s32 %s348, 1
      %p352 = scmp.eq.s32.totalorder %s39, 1
      %p353 = scmp.ne.s32.totalorder %s348, %s350
      %p354 = scmp.eq.s32.totalorder %s39, 0
      %p355 = por %p353, %p354
      %p356 = scmp.ne.s32.totalorder %s348, %s350
      %p357 = scmp.eq.s32.totalorder %s44, 1
      %p358 = por %p356, %p357
      %p359 = scmp.ne.s32.totalorder %s350, %s351
      %p360 = scmp.eq.s32.totalorder %s44, 0
      %p361 = por %p359, %p360
      %p362 = scmp.ne.s32.totalorder %s350, %s351
      %p363 = scmp.eq.s32.totalorder %s45, 1
      %p364 = por %p362, %p363
      %p366 = scmp.ne.s32.totalorder %s351, %s365
      %p367 = scmp.eq.s32.totalorder %s45, 0
      %p368 = por %p366, %p367
      %s369 = ssub.s32 %s46, %s58
      %s370 = ssub.s32 %s47, %s54
      %s371 = sor.u32 %s369, %s370
      %p372 = scmp.eq.s32.totalorder %s371, 0
      %s374 = sadd.s32 %s373, 1
      %s375 = scalar_select %p372, %s373, %s374
      %p378 = pneg %p372
      %p379 = scmp.eq.s32.totalorder %s39, 1
      %p380 = por %p378, %p379
      %p381 = scmp.ne.s32.totalorder %s373, %s376
      %p382 = scmp.eq.s32.totalorder %s39, 0
      %p383 = por %p381, %p382
      %p384 = scmp.ne.s32.totalorder %s373, %s376
      %p385 = scmp.eq.s32.totalorder %s44, 1
      %p386 = por %p384, %p385
      %p387 = scmp.ne.s32.totalorder %s376, %s377
      %p388 = scmp.eq.s32.totalorder %s44, 0
      %p389 = por %p387, %p388
      %p390 = scmp.ne.s32.totalorder %s376, %s377
      %p391 = scmp.eq.s32.totalorder %s45, 1
      %p392 = por %p390, %p391
      %p394 = scmp.ne.s32.totalorder %s377, %s393
      %p395 = scmp.eq.s32.totalorder %s45, 0
      %p396 = por %p394, %p395
      %s397 = ssub.s32 %s46, %s58
      %s398 = ssub.s32 %s47, %s54
      %s399 = sor.u32 %s397, %s398
      %p400 = scmp.eq.s32.totalorder %s399, 0
      %s402 = sadd.s32 %s401, 1
      %s403 = scalar_select %p400, %s401, %s402
      %p406 = pneg %p400
      %p407 = scmp.eq.s32.totalorder %s39, 1
      %p408 = por %p406, %p407
      %p409 = scmp.ne.s32.totalorder %s401, %s404
      %p410 = scmp.eq.s32.totalorder %s39, 0
      %p411 = por %p409, %p410
      %p412 = scmp.ne.s32.totalorder %s401, %s404
      %p413 = scmp.eq.s32.totalorder %s44, 1
      %p414 = por %p412, %p413
      %p415 = scmp.ne.s32.totalorder %s404, %s405
      %p416 = scmp.eq.s32.totalorder %s44, 0
      %p417 = por %p415, %p416
      %p418 = scmp.ne.s32.totalorder %s404, %s405
      %p419 = scmp.eq.s32.totalorder %s45, 1
      %p420 = por %p418, %p419
      %p422 = scmp.ne.s32.totalorder %s405, %s421
      %p423 = scmp.eq.s32.totalorder %s45, 0
      %p424 = por %p422, %p423
      %p425 = scmp.le.s32.totalorder 1, %s39
      %p426 = scmp.lt.s32.totalorder %s39, 3
      %p427 = pnand %p425, %p426
      %p428 = pneg %p427
      // Predicated region
      $region9: #{tpu_custom_call.1} parent=5 // pred_check
        _
      $region10: #{tpu_custom_call.1} parent=5 // pred_check_branch
        %430 = sbr.rel (%p427) target = $region12
      $region11: #{tpu_custom_call.1} parent=5 // pred_region
        %s431 = ssub.s32 %s39, 1
        // Predicated region
        $region13: #{tpu_custom_call.1} parent=11 // pred_check
          %p432 = pneg %p152
        $region14: #{tpu_custom_call.1} parent=11 // pred_check_branch
          %434 = sbr.rel (%p432) target = $region16
        $region15: #{tpu_custom_call.1} parent=11 // pred_region
          %s436 = ssub.s32 2048, 2048
          %437 = vsyncadd [#allocation6], %s436
          %s438 = sshll.u32 [#allocation7], 4
          %s439 = int_to_ptr.vmem [resolvable:$true] %s438
          %444 = dma.hbm_to_vmem [thread:$0]  %s3, 2048, %s439, [#allocation6], 128, 128, 8
        $region16: #{tpu_custom_call.1} parent=11 // pred_fallthru
          _
        // Predicated region
        $region17: #{tpu_custom_call.1} parent=11 // pred_check
          %p445 = pneg %p173
        $region18: #{tpu_custom_call.1} parent=11 // pred_check_branch
          %447 = sbr.rel (%p445) target = $region20
        $region19: #{tpu_custom_call.1} parent=11 // pred_region
          _
        $region20: #{tpu_custom_call.1} parent=11 // pred_fallthru
          _
        // Predicated region
        $region21: #{tpu_custom_call.1} parent=11 // pred_check
          %p448 = pneg %p246
        $region22: #{tpu_custom_call.1} parent=11 // pred_check_branch
          %450 = sbr.rel (%p448) target = $region24
        $region23: #{tpu_custom_call.1} parent=11 // pred_region
          %s452 = ssub.s32 2048, 2048
          %453 = vsyncadd [#allocation9], %s452
          %s454 = sshll.u32 [#allocation10], 4
          %s455 = int_to_ptr.vmem [resolvable:$true] %s454
          %460 = dma.hbm_to_vmem [thread:$0]  %s7, 2048, %s455, [#allocation9], 64, 64, 4
        $region24: #{tpu_custom_call.1} parent=11 // pred_fallthru
          _
        // Predicated region
        $region25: #{tpu_custom_call.1} parent=11 // pred_check
          %p461 = pneg %p267
        $region26: #{tpu_custom_call.1} parent=11 // pred_check_branch
          %463 = sbr.rel (%p461) target = $region28
        $region27: #{tpu_custom_call.1} parent=11 // pred_region
          _
        $region28: #{tpu_custom_call.1} parent=11 // pred_fallthru
          _
        // Predicated region
        $region29: #{tpu_custom_call.1} parent=11 // pred_check
          %p464 = pneg %p340
        $region30: #{tpu_custom_call.1} parent=11 // pred_check_branch
          %466 = sbr.rel (%p464) target = $region32
        $region31: #{tpu_custom_call.1} parent=11 // pred_region
          %s468 = ssub.s32 1024, 1024
          %469 = vsyncadd [#allocation12], %s468
          %s470 = sshll.u32 [#allocation13], 4
          %s471 = int_to_ptr.vmem [resolvable:$true] %s470
          %476 = dma.hbm_to_vmem [thread:$0]  %s11, 1024, %s471, [#allocation12], 64, 64, 4
        $region32: #{tpu_custom_call.1} parent=11 // pred_fallthru
          _
        // Predicated region
        $region33: #{tpu_custom_call.1} parent=11 // pred_check
          %p477 = pneg %p361
        $region34: #{tpu_custom_call.1} parent=11 // pred_check_branch
          %479 = sbr.rel (%p477) target = $region36
        $region35: #{tpu_custom_call.1} parent=11 // pred_region
          _
        $region36: #{tpu_custom_call.1} parent=11 // pred_fallthru
          _
      $region12: #{tpu_custom_call.1} parent=5 // pred_fallthru
        _
      %p480 = scmp.lt.s32.totalorder %s39, 2
      // Predicated region
      $region37: #{tpu_custom_call.1} parent=5 // pred_check
        %p481 = pneg %p480
      $region38: #{tpu_custom_call.1} parent=5 // pred_check_branch
        %483 = sbr.rel (%p481) target = $region40
      $region39: #{tpu_custom_call.1} parent=5 // pred_region
        // Predicated region
        $region41: #{tpu_custom_call.1} parent=39 // pred_check
          %p484 = pneg %p73
        $region42: #{tpu_custom_call.1} parent=39 // pred_check_branch
          %486 = sbr.rel (%p484) target = $region44
        $region43: #{tpu_custom_call.1} parent=39 // pred_region
          %s487 = sand.u32 %s63, 1
          %s488 = scalar_lea.sflag [#allocation3], %s487
          %s489 = sand.u32 %s63, 1
          %s490 = smul.addr %s489, 4
          %s491 = scalar_lea.vmem [#allocation2], %s490
          %s493 = ssub.s32 64, 64
          %494 = vsyncadd %s488, %s493
          %s495 = sadd.s32 %s47, %s46
          %s496 = smul.addr %s495, 64
          %s497 = scalar_lea.hbm %s0, %s496
          %s499 = sshll.u32 %s491, 4
          %s500 = int_to_ptr.vmem [resolvable:$true] %s499
          %502 = dma.hbm_to_vmem [thread:$0]  %s497, 64, %s500, %s488
        $region44: #{tpu_custom_call.1} parent=39 // pred_fallthru
          _
        // Predicated region
        $region45: #{tpu_custom_call.1} parent=39 // pred_check
          %p503 = pneg %p99
        $region46: #{tpu_custom_call.1} parent=39 // pred_check_branch
          %505 = sbr.rel (%p503) target = $region48
        $region47: #{tpu_custom_call.1} parent=39 // pred_region
          %s506 = sand.u32 %s39, 1
          %s507 = scalar_lea.sflag [#allocation6], %s506
          %s508 = sand.u32 %s89, 1
          %s509 = smul.addr %s508, 128
          %s510 = scalar_lea.vmem [#allocation5], %s509
          %s512 = ssub.s32 2048, 2048
          %513 = vsyncadd %s507, %s512
          %s514 = smul.addr %s46, 32
          %s515 = smul.addr %s514, 64
          %s516 = scalar_lea.hbm %s1, %s515
          %s517 = sshll.u32 %s510, 4
          %s518 = int_to_ptr.vmem [resolvable:$true] %s517
          %523 = dma.hbm_to_vmem [thread:$0]  %s516, 2048, %s518, %s507, 128, 128, 8
        $region48: #{tpu_custom_call.1} parent=39 // pred_fallthru
          _
        // Predicated region
        $region49: #{tpu_custom_call.1} parent=39 // pred_check
          %p524 = pneg %p125
        $region50: #{tpu_custom_call.1} parent=39 // pred_check_branch
          %526 = sbr.rel (%p524) target = $region52
        $region51: #{tpu_custom_call.1} parent=39 // pred_region
          %p527 = scmp.lt.s32.totalorder %s46, 1
          %s528 = scalar_select %p527, %s46, 1
          %s529 = smul.addr %s528, 2
          %s530 = scalar_lea.vmem %s2, %s529
        $region52: #{tpu_custom_call.1} parent=39 // pred_fallthru
          _
        // Predicated region
        $region53: #{tpu_custom_call.1} parent=39 // pred_check
          %p531 = pneg %p193
        $region54: #{tpu_custom_call.1} parent=39 // pred_check_branch
          %533 = sbr.rel (%p531) target = $region56
        $region55: #{tpu_custom_call.1} parent=39 // pred_region
          %s534 = sand.u32 %s39, 1
          %s535 = scalar_lea.sflag [#allocation9], %s534
          %s536 = sand.u32 %s183, 1
          %s537 = smul.addr %s536, 128
          %s538 = scalar_lea.vmem [#allocation8], %s537
          %s540 = ssub.s32 2048, 2048
          %541 = vsyncadd %s535, %s540
          %s542 = smul.addr %s46, 32
          %s543 = smul.addr %s542, 64
          %s544 = scalar_lea.hbm %s5, %s543
          %s545 = sshll.u32 %s538, 4
          %s546 = int_to_ptr.vmem [resolvable:$true] %s545
          %551 = dma.hbm_to_vmem [thread:$0]  %s544, 2048, %s546, %s535, 64, 64, 4
        $region56: #{tpu_custom_call.1} parent=39 // pred_fallthru
          _
        // Predicated region
        $region57: #{tpu_custom_call.1} parent=39 // pred_check
          %p552 = pneg %p219
        $region58: #{tpu_custom_call.1} parent=39 // pred_check_branch
          %554 = sbr.rel (%p552) target = $region60
        $region59: #{tpu_custom_call.1} parent=39 // pred_region
          %p555 = scmp.lt.s32.totalorder %s46, 1
          %s556 = scalar_select %p555, %s46, 1
          %s557 = scalar_lea.vmem %s6, %s556
        $region60: #{tpu_custom_call.1} parent=39 // pred_fallthru
          _
        // Predicated region
        $region61: #{tpu_custom_call.1} parent=39 // pred_check
          %p558 = pneg %p287
        $region62: #{tpu_custom_call.1} parent=39 // pred_check_branch
          %560 = sbr.rel (%p558) target = $region64
        $region63: #{tpu_custom_call.1} parent=39 // pred_region
          %s561 = sand.u32 %s39, 1
          %s562 = scalar_lea.sflag [#allocation12], %s561
          %s563 = sand.u32 %s277, 1
          %s564 = smul.addr %s563, 64
          %s565 = scalar_lea.vmem [#allocation11], %s564
          %s567 = ssub.s32 1024, 1024
          %568 = vsyncadd %s562, %s567
          %s569 = smul.addr %s46, 16
          %s570 = smul.addr %s569, 64
          %s571 = scalar_lea.hbm %s9, %s570
          %s572 = sshll.u32 %s565, 4
          %s573 = int_to_ptr.vmem [resolvable:$true] %s572
          %578 = dma.hbm_to_vmem [thread:$0]  %s571, 1024, %s573, %s562, 64, 64, 4
        $region64: #{tpu_custom_call.1} parent=39 // pred_fallthru
          _
        // Predicated region
        $region65: #{tpu_custom_call.1} parent=39 // pred_check
          %p579 = pneg %p313
        $region66: #{tpu_custom_call.1} parent=39 // pred_check_branch
          %581 = sbr.rel (%p579) target = $region68
        $region67: #{tpu_custom_call.1} parent=39 // pred_region
          %p582 = scmp.lt.s32.totalorder %s46, 1
          %s583 = scalar_select %p582, %s46, 1
          %s584 = scalar_lea.vmem %s10, %s583
        $region68: #{tpu_custom_call.1} parent=39 // pred_fallthru
          _
      $region40: #{tpu_custom_call.1} parent=5 // pred_fallthru
        _
      %p585 = scmp.le.s32.totalorder 1, %s39
      %p586 = scmp.lt.s32.totalorder %s39, 3
      %p587 = pnand %p585, %p586
      %p588 = pneg %p587
      // Predicated region
      $region69: #{tpu_custom_call.1} parent=5 // pred_check
        _
      $region70: #{tpu_custom_call.1} parent=5 // pred_check_branch
        %590 = sbr.rel (%p587) target = $region72
      $region71: #{tpu_custom_call.1} parent=5 // pred_region
        %s591 = ssub.s32 %s39, 1
        %s592 = sand.u32 %s66, 1
        %s593 = scalar_lea.sflag [#allocation3], %s592
        %s594 = sand.u32 %s66, 1
        %s595 = smul.addr %s594, 4
        %s596 = scalar_lea.vmem [#allocation2], %s595
        // Predicated region
        $region73: #{tpu_custom_call.1} parent=71 // pred_check
          %p597 = pneg %p79
        $region74: #{tpu_custom_call.1} parent=71 // pred_check_branch
          %599 = sbr.rel (%p597) target = $region76
        $region75: #{tpu_custom_call.1} parent=71 // pred_region
          %600 = dma.done %s593, 64
        $region76: #{tpu_custom_call.1} parent=71 // pred_fallthru
          _
        %s601 = sand.u32 %s44, 1
        %s602 = scalar_lea.sflag [#allocation6], %s601
        %s603 = sand.u32 %s92, 1
        %s604 = smul.addr %s603, 128
        %s605 = scalar_lea.vmem [#allocation5], %s604
        // Predicated region
        $region77: #{tpu_custom_call.1} parent=71 // pred_check
          %p606 = pneg %p105
        $region78: #{tpu_custom_call.1} parent=71 // pred_check_branch
          %608 = sbr.rel (%p606) target = $region80
        $region79: #{tpu_custom_call.1} parent=71 // pred_region
          %609 = dma.done %s602, 2048
        $region80: #{tpu_custom_call.1} parent=71 // pred_fallthru
          _
        // Predicated region
        $region81: #{tpu_custom_call.1} parent=71 // pred_check
          %p610 = pneg %p152
        $region82: #{tpu_custom_call.1} parent=71 // pred_check_branch
          %612 = sbr.rel (%p610) target = $region84
        $region83: #{tpu_custom_call.1} parent=71 // pred_region
          %613 = dma.done [#allocation6], 2048
        $region84: #{tpu_custom_call.1} parent=71 // pred_fallthru
          _
        %s614 = sand.u32 %s44, 1
        %s615 = scalar_lea.sflag [#allocation9], %s614
        %s616 = sand.u32 %s186, 1
        %s617 = smul.addr %s616, 128
        %s618 = scalar_lea.vmem [#allocation8], %s617
        // Predicated region
        $region85: #{tpu_custom_call.1} parent=71 // pred_check
          %p619 = pneg %p199
        $region86: #{tpu_custom_call.1} parent=71 // pred_check_branch
          %621 = sbr.rel (%p619) target = $region88
        $region87: #{tpu_custom_call.1} parent=71 // pred_region
          %622 = dma.done %s615, 2048
        $region88: #{tpu_custom_call.1} parent=71 // pred_fallthru
          _
        // Predicated region
        $region89: #{tpu_custom_call.1} parent=71 // pred_check
          %p623 = pneg %p246
        $region90: #{tpu_custom_call.1} parent=71 // pred_check_branch
          %625 = sbr.rel (%p623) target = $region92
        $region91: #{tpu_custom_call.1} parent=71 // pred_region
          %626 = dma.done [#allocation9], 2048
        $region92: #{tpu_custom_call.1} parent=71 // pred_fallthru
          _
        %s627 = sand.u32 %s44, 1
        %s628 = scalar_lea.sflag [#allocation12], %s627
        %s629 = sand.u32 %s280, 1
        %s630 = smul.addr %s629, 64
        %s631 = scalar_lea.vmem [#allocation11], %s630
        // Predicated region
        $region93: #{tpu_custom_call.1} parent=71 // pred_check
          %p632 = pneg %p293
        $region94: #{tpu_custom_call.1} parent=71 // pred_check_branch
          %634 = sbr.rel (%p632) target = $region96
        $region95: #{tpu_custom_call.1} parent=71 // pred_region
          %635 = dma.done %s628, 1024
        $region96: #{tpu_custom_call.1} parent=71 // pred_fallthru
          _
        // Predicated region
        $region97: #{tpu_custom_call.1} parent=71 // pred_check
          %p636 = pneg %p340
        $region98: #{tpu_custom_call.1} parent=71 // pred_check_branch
          %638 = sbr.rel (%p636) target = $region100
        $region99: #{tpu_custom_call.1} parent=71 // pred_region
          %639 = dma.done [#allocation12], 1024
        $region100: #{tpu_custom_call.1} parent=71 // pred_fallthru
          _
        %s640 = sand.u32 %s66, 1
        %s641 = scalar_lea.sflag [#allocation3], %s640
        %s642 = sand.u32 %s66, 1
        %s643 = smul.addr %s642, 4
        %s644 = scalar_lea.vmem [#allocation2], %s643
        %p645 = pneg %p79
        %p646 = pneg %p76
        %s647 = sand.u32 %s44, 1
        %s648 = scalar_lea.sflag [#allocation6], %s647
        %s649 = sand.u32 %s92, 1
        %s650 = smul.addr %s649, 128
        %s651 = scalar_lea.vmem [#allocation5], %s650
        %p652 = pneg %p105
        %p653 = pneg %p102
        %p654 = scmp.lt.s32.totalorder %s48, 1
        %s655 = scalar_select %p654, %s48, 1
        %s656 = smul.addr %s655, 2
        %s657 = scalar_lea.vmem %s2, %s656
        %p658 = pneg %p131
        %p659 = pneg %p128
        %p660 = pneg %p152
        %p661 = pneg %p149
        %p662 = pneg %p173
        %p663 = pneg %p170
        %s664 = sand.u32 %s44, 1
        %s665 = scalar_lea.sflag [#allocation9], %s664
        %s666 = sand.u32 %s186, 1
        %s667 = smul.addr %s666, 128
        %s668 = scalar_lea.vmem [#allocation8], %s667
        %p669 = pneg %p199
        %p670 = pneg %p196
        %p671 = scmp.lt.s32.totalorder %s48, 1
        %s672 = scalar_select %p671, %s48, 1
        %s673 = scalar_lea.vmem %s6, %s672
        %p674 = pneg %p225
        %p675 = pneg %p222
        %p676 = pneg %p246
        %p677 = pneg %p243
        %p678 = pneg %p267
        %p679 = pneg %p264
        %s680 = sand.u32 %s44, 1
        %s681 = scalar_lea.sflag [#allocation12], %s680
        %s682 = sand.u32 %s280, 1
        %s683 = smul.addr %s682, 64
        %s684 = scalar_lea.vmem [#allocation11], %s683
        %p685 = pneg %p293
        %p686 = pneg %p290
        %p687 = scmp.lt.s32.totalorder %s48, 1
        %s688 = scalar_select %p687, %s48, 1
        %s689 = scalar_lea.vmem %s10, %s688
        %p690 = pneg %p319
        %p691 = pneg %p316
        %p692 = pneg %p340
        %p693 = pneg %p337
        %p694 = pneg %p361
        %p695 = pneg %p358
        %p696 = pneg %p389
        %p697 = pneg %p386
        %s698 = sand.u32 %s376, 1
        %s699 = scalar_lea.sflag [#allocation4], %s698
        %s700 = sand.u32 %s376, 1
        %s701 = smul.addr %s700, 8
        %s702 = scalar_lea.vmem [#allocation14], %s701
        %p703 = pneg %p417
        %p704 = pneg %p414
        %s705 = sand.u32 %s404, 1
        %s706 = scalar_lea.sflag [#allocation16], %s705
        %s707 = sand.u32 %s404, 1
        %s708 = smul.addr %s707, 8
        %s709 = scalar_lea.vmem [#allocation15], %s708
        %p710 = scmp.lt.s32.totalorder %s48, 1
        %s711 = scalar_select %p710, %s48, 1
        %s712 = smul.addr %s711, 2
        %s713 = scalar_lea.vmem %s2, %s712
        %p714 = scmp.lt.s32.totalorder %s48, 1
        %s715 = scalar_select %p714, %s48, 1
        %s716 = scalar_lea.vmem %s6, %s715
        %p717 = scmp.lt.s32.totalorder %s48, 1
        %s718 = scalar_select %p717, %s48, 1
        %s719 = scalar_lea.vmem %s10, %s718
        %v721 = vld [vmem:[%s596] sm:$0xf]
        %v722 = vld [vmem:[%s605] sm:$0xff]
        %v723 = vld [vmem:[%s605 + $0x8] sm:$0xff]
        %v724 = vld [vmem:[%s605 + $0x10] sm:$0xff]
        %v725 = vld [vmem:[%s605 + $0x18] sm:$0xff]
        %v726 = vld [vmem:[%s605 + $0x20] sm:$0xff]
        %v727 = vld [vmem:[%s605 + $0x28] sm:$0xff]
        %v728 = vld [vmem:[%s605 + $0x30] sm:$0xff]
        %v729 = vld [vmem:[%s605 + $0x38] sm:$0xff]
        %v730 = vld [vmem:[%s605 + $0x40] sm:$0xff]
        %v731 = vld [vmem:[%s605 + $0x48] sm:$0xff]
        %v732 = vld [vmem:[%s605 + $0x50] sm:$0xff]
        %v733 = vld [vmem:[%s605 + $0x58] sm:$0xff]
        %v734 = vld [vmem:[%s605 + $0x60] sm:$0xff]
        %v735 = vld [vmem:[%s605 + $0x68] sm:$0xff]
        %v736 = vld [vmem:[%s605 + $0x70] sm:$0xff]
        %v737 = vld [vmem:[%s605 + $0x78] sm:$0xff]
        %v738 = vld [vmem:[%s713] sm:$0x3]
        %v739 = vld [vmem:[#allocation7] sm:$0xff]
        %v740 = vld [vmem:[#allocation7 + $0x8] sm:$0xff]
        %v741 = vld [vmem:[#allocation7 + $0x10] sm:$0xff]
        %v742 = vld [vmem:[#allocation7 + $0x18] sm:$0xff]
        %v743 = vld [vmem:[#allocation7 + $0x20] sm:$0xff]
        %v744 = vld [vmem:[#allocation7 + $0x28] sm:$0xff]
        %v745 = vld [vmem:[#allocation7 + $0x30] sm:$0xff]
        %v746 = vld [vmem:[#allocation7 + $0x38] sm:$0xff]
        %v747 = vld [vmem:[#allocation7 + $0x40] sm:$0xff]
        %v748 = vld [vmem:[#allocation7 + $0x48] sm:$0xff]
        %v749 = vld [vmem:[#allocation7 + $0x50] sm:$0xff]
        %v750 = vld [vmem:[#allocation7 + $0x58] sm:$0xff]
        %v751 = vld [vmem:[#allocation7 + $0x60] sm:$0xff]
        %v752 = vld [vmem:[#allocation7 + $0x68] sm:$0xff]
        %v753 = vld [vmem:[#allocation7 + $0x70] sm:$0xff]
        %v754 = vld [vmem:[#allocation7 + $0x78] sm:$0xff]
        %v755 = vld [vmem:[%s4] sm:$0x3]
        %v757 = vlaneseq
        %v758 = vshrl.u32 %v757, 7
        %v759 = vsub.s32 0, %v758
        %v760 = vrot.slane %v738, %v759
        %v761 = vlaneseq
        %v762 = vshrl.u32 %v761, 7
        %v763 = vsub.s32 1, %v762
        %v764 = vrot.slane %v738, %v763
        %v783 = vunpack.c.l.b16 %v722
        %v784 = vunpack.c.h.b16 %v722
        %v785 = vunpack.c.l.b16 %v723
        %v786 = vunpack.c.h.b16 %v723
        %v787 = vunpack.c.l.b16 %v724
        %v788 = vunpack.c.h.b16 %v724
        %v789 = vunpack.c.l.b16 %v725
        %v790 = vunpack.c.h.b16 %v725
        %v791 = vunpack.c.l.b16 %v726
        %v792 = vunpack.c.h.b16 %v726
        %v793 = vunpack.c.l.b16 %v727
        %v794 = vunpack.c.h.b16 %v727
        %v795 = vunpack.c.l.b16 %v728
        %v796 = vunpack.c.h.b16 %v728
        %v797 = vunpack.c.l.b16 %v729
        %v798 = vunpack.c.h.b16 %v729
        %v799 = vunpack.c.l.b16 %v730
        %v800 = vunpack.c.h.b16 %v730
        %v801 = vunpack.c.l.b16 %v731
        %v802 = vunpack.c.h.b16 %v731
        %v803 = vunpack.c.l.b16 %v732
        %v804 = vunpack.c.h.b16 %v732
        %v805 = vunpack.c.l.b16 %v733
        %v806 = vunpack.c.h.b16 %v733
        %v807 = vunpack.c.l.b16 %v734
        %v808 = vunpack.c.h.b16 %v734
        %v809 = vunpack.c.l.b16 %v735
        %v810 = vunpack.c.h.b16 %v735
        %v811 = vunpack.c.l.b16 %v736
        %v812 = vunpack.c.h.b16 %v736
        %v813 = vunpack.c.l.b16 %v737
        %v814 = vunpack.c.h.b16 %v737
        %v815 = vpack.c.b16 %v785, %v783
        %v816 = vpack.c.b16 %v786, %v784
        %v817 = vpack.c.b16 %v789, %v787
        %v818 = vpack.c.b16 %v790, %v788
        %v819 = vpack.c.b16 %v793, %v791
        %v820 = vpack.c.b16 %v794, %v792
        %v821 = vpack.c.b16 %v797, %v795
        %v822 = vpack.c.b16 %v798, %v796
        %v823 = vpack.c.b16 %v801, %v799
        %v824 = vpack.c.b16 %v802, %v800
        %v825 = vpack.c.b16 %v805, %v803
        %v826 = vpack.c.b16 %v806, %v804
        %v827 = vpack.c.b16 %v809, %v807
        %v828 = vpack.c.b16 %v810, %v808
        %v829 = vpack.c.b16 %v813, %v811
        %v830 = vpack.c.b16 %v814, %v812
        %847 = vmatprep.subr.bf16.mxu0 %v816
        %848 = vmatpush1.bf16.msra.mxu0 %v815
        %849 = vmatprep.subr.bf16.mxu0 %v818
        %850 = vmatpush1.bf16.msra.mxu0 %v817
        %851 = vmatprep.subr.bf16.mxu0 %v820
        %852 = vmatpush1.bf16.msra.mxu0 %v819
        %853 = vmatprep.subr.bf16.mxu0 %v822
        %854 = vmatpush1.bf16.msra.mxu0 %v821
        %855 = vmatprep.subr.bf16.mxu0 %v824
        %856 = vmatpush1.bf16.msra.mxu0 %v823
        %857 = vmatprep.subr.bf16.mxu0 %v826
        %858 = vmatpush1.bf16.msra.mxu0 %v825
        %859 = vmatprep.subr.bf16.mxu0 %v828
        %860 = vmatpush1.bf16.msra.mxu0 %v827
        %861 = vmatprep.subr.bf16.mxu0 %v830
        %862 = vmatpush1.bf16.msra.mxu0 %v829
        %863 = vmatprep.subr.bf16.mxu0 0
        %864 = vmatpush1.bf16.msra.mxu0 0
        %865 = vmatprep.subr.bf16.mxu0 0
        %866 = vmatpush1.bf16.msra.mxu0 0
        %867 = vmatprep.subr.bf16.mxu0 0
        %868 = vmatpush1.bf16.msra.mxu0 0
        %869 = vmatprep.subr.bf16.mxu0 0
        %870 = vmatpush1.bf16.msra.mxu0 0
        %871 = vmatprep.subr.bf16.mxu0 0
        %872 = vmatpush1.bf16.msra.mxu0 0
        %873 = vmatprep.subr.bf16.mxu0 0
        %874 = vmatpush1.bf16.msra.mxu0 0
        %875 = vmatprep.subr.bf16.mxu0 0
        %876 = vmatpush1.bf16.msra.mxu0 0
        %877 = vmatprep.subr.bf16.mxu0 0
        %878 = vmatpush1.bf16.msra.mxu0 0
        %879 = vmatprep.mubr.bf16.mxu0 0
        %880 = vmatmul.mubr.bf16.gmra.mrb[0].mxu0 %v721
        %v881 = vpop.f32.mrb[0].mxu0
        %v882 = vadd.f32 %v760, %v881
        %v883 = vpop.f32.mrb[0].mxu0
        %v884 = vadd.f32 %v764, %v883
        %v885 = vpop.f32.mrb[0].mxu0
        %v886 = vpop.f32.mrb[0].mxu0
        %887 = vdwg.mxu0
        %v889 = vlaneseq
        %v890 = vshrl.u32 %v889, 7
        %v891 = vsub.s32 0, %v890
        %v892 = vrot.slane %v755, %v891
        %v893 = vlaneseq
        %v894 = vshrl.u32 %v893, 7
        %v895 = vsub.s32 1, %v894
        %v896 = vrot.slane %v755, %v895
        %v915 = vunpack.c.l.b16 %v739
        %v916 = vunpack.c.h.b16 %v739
        %v917 = vunpack.c.l.b16 %v740
        %v918 = vunpack.c.h.b16 %v740
        %v919 = vunpack.c.l.b16 %v741
        %v920 = vunpack.c.h.b16 %v741
        %v921 = vunpack.c.l.b16 %v742
        %v922 = vunpack.c.h.b16 %v742
        %v923 = vunpack.c.l.b16 %v743
        %v924 = vunpack.c.h.b16 %v743
        %v925 = vunpack.c.l.b16 %v744
        %v926 = vunpack.c.h.b16 %v744
        %v927 = vunpack.c.l.b16 %v745
        %v928 = vunpack.c.h.b16 %v745
        %v929 = vunpack.c.l.b16 %v746
        %v930 = vunpack.c.h.b16 %v746
        %v931 = vunpack.c.l.b16 %v747
        %v932 = vunpack.c.h.b16 %v747
        %v933 = vunpack.c.l.b16 %v748
        %v934 = vunpack.c.h.b16 %v748
        %v935 = vunpack.c.l.b16 %v749
        %v936 = vunpack.c.h.b16 %v749
        %v937 = vunpack.c.l.b16 %v750
        %v938 = vunpack.c.h.b16 %v750
        %v939 = vunpack.c.l.b16 %v751
        %v940 = vunpack.c.h.b16 %v751
        %v941 = vunpack.c.l.b16 %v752
        %v942 = vunpack.c.h.b16 %v752
        %v943 = vunpack.c.l.b16 %v753
        %v944 = vunpack.c.h.b16 %v753
        %v945 = vunpack.c.l.b16 %v754
        %v946 = vunpack.c.h.b16 %v754
        %v947 = vpack.c.b16 %v917, %v915
        %v948 = vpack.c.b16 %v918, %v916
        %v949 = vpack.c.b16 %v921, %v919
        %v950 = vpack.c.b16 %v922, %v920
        %v951 = vpack.c.b16 %v925, %v923
        %v952 = vpack.c.b16 %v926, %v924
        %v953 = vpack.c.b16 %v929, %v927
        %v954 = vpack.c.b16 %v930, %v928
        %v955 = vpack.c.b16 %v933, %v931
        %v956 = vpack.c.b16 %v934, %v932
        %v957 = vpack.c.b16 %v937, %v935
        %v958 = vpack.c.b16 %v938, %v936
        %v959 = vpack.c.b16 %v941, %v939
        %v960 = vpack.c.b16 %v942, %v940
        %v961 = vpack.c.b16 %v945, %v943
        %v962 = vpack.c.b16 %v946, %v944
        %979 = vmatprep.subr.bf16.mxu0 %v948
        %980 = vmatpush1.bf16.msra.mxu0 %v947
        %981 = vmatprep.subr.bf16.mxu0 %v950
        %982 = vmatpush1.bf16.msra.mxu0 %v949
        %983 = vmatprep.subr.bf16.mxu0 %v952
        %984 = vmatpush1.bf16.msra.mxu0 %v951
        %985 = vmatprep.subr.bf16.mxu0 %v954
        %986 = vmatpush1.bf16.msra.mxu0 %v953
        %987 = vmatprep.subr.bf16.mxu0 %v956
        %988 = vmatpush1.bf16.msra.mxu0 %v955
        %989 = vmatprep.subr.bf16.mxu0 %v958
        %990 = vmatpush1.bf16.msra.mxu0 %v957
        %991 = vmatprep.subr.bf16.mxu0 %v960
        %992 = vmatpush1.bf16.msra.mxu0 %v959
        %993 = vmatprep.subr.bf16.mxu0 %v962
        %994 = vmatpush1.bf16.msra.mxu0 %v961
        %995 = vmatprep.subr.bf16.mxu0 0
        %996 = vmatpush1.bf16.msra.mxu0 0
        %997 = vmatprep.subr.bf16.mxu0 0
        %998 = vmatpush1.bf16.msra.mxu0 0
        %999 = vmatprep.subr.bf16.mxu0 0
        %1000 = vmatpush1.bf16.msra.mxu0 0
        %1001 = vmatprep.subr.bf16.mxu0 0
        %1002 = vmatpush1.bf16.msra.mxu0 0
        %1003 = vmatprep.subr.bf16.mxu0 0
        %1004 = vmatpush1.bf16.msra.mxu0 0
        %1005 = vmatprep.subr.bf16.mxu0 0
        %1006 = vmatpush1.bf16.msra.mxu0 0
        %1007 = vmatprep.subr.bf16.mxu0 0
        %1008 = vmatpush1.bf16.msra.mxu0 0
        %1009 = vmatprep.subr.bf16.mxu0 0
        %1010 = vmatpush1.bf16.msra.mxu0 0
        %1011 = vmatprep.mubr.bf16.mxu0 0
        %1012 = vmatmul.mubr.bf16.gmra.mrb[0].mxu0 %v721
        %v1013 = vpop.f32.mrb[0].mxu0
        %v1014 = vadd.f32 %v892, %v1013
        %v1015 = vpop.f32.mrb[0].mxu0
        %v1016 = vadd.f32 %v896, %v1015
        %v1017 = vpop.f32.mrb[0].mxu0
        %v1018 = vpop.f32.mrb[0].mxu0
        %1019 = vdwg.mxu0
        %v1020 = vmax.f32 %v882, 0.0
        %v1021 = vmax.f32 %v884, 0.0
        %v1022 = vmax.f32 %v1014, 0.0
        %v1023 = vmax.f32 %v1016, 0.0
        %v1024 = vld [vmem:[%s618] sm:$0xf]
        %v1025 = vld [vmem:[%s618 + $0x4] sm:$0xf]
        %v1026 = vld [vmem:[%s618 + $0x8] sm:$0xf]
        %v1027 = vld [vmem:[%s618 + $0xc] sm:$0xf]
        %v1028 = vld [vmem:[%s618 + $0x10] sm:$0xf]
        %v1029 = vld [vmem:[%s618 + $0x14] sm:$0xf]
        %v1030 = vld [vmem:[%s618 + $0x18] sm:$0xf]
        %v1031 = vld [vmem:[%s618 + $0x1c] sm:$0xf]
        %v1032 = vld [vmem:[%s618 + $0x20] sm:$0xf]
        %v1033 = vld [vmem:[%s618 + $0x24] sm:$0xf]
        %v1034 = vld [vmem:[%s618 + $0x28] sm:$0xf]
        %v1035 = vld [vmem:[%s618 + $0x2c] sm:$0xf]
        %v1036 = vld [vmem:[%s618 + $0x30] sm:$0xf]
        %v1037 = vld [vmem:[%s618 + $0x34] sm:$0xf]
        %v1038 = vld [vmem:[%s618 + $0x38] sm:$0xf]
        %v1039 = vld [vmem:[%s618 + $0x3c] sm:$0xf]
        %v1040 = vld [vmem:[%s618 + $0x40] sm:$0xf]
        %v1041 = vld [vmem:[%s618 + $0x44] sm:$0xf]
        %v1042 = vld [vmem:[%s618 + $0x48] sm:$0xf]
        %v1043 = vld [vmem:[%s618 + $0x4c] sm:$0xf]
        %v1044 = vld [vmem:[%s618 + $0x50] sm:$0xf]
        %v1045 = vld [vmem:[%s618 + $0x54] sm:$0xf]
        %v1046 = vld [vmem:[%s618 + $0x58] sm:$0xf]
        %v1047 = vld [vmem:[%s618 + $0x5c] sm:$0xf]
        %v1048 = vld [vmem:[%s618 + $0x60] sm:$0xf]
        %v1049 = vld [vmem:[%s618 + $0x64] sm:$0xf]
        %v1050 = vld [vmem:[%s618 + $0x68] sm:$0xf]
        %v1051 = vld [vmem:[%s618 + $0x6c] sm:$0xf]
        %v1052 = vld [vmem:[%s618 + $0x70] sm:$0xf]
        %v1053 = vld [vmem:[%s618 + $0x74] sm:$0xf]
        %v1054 = vld [vmem:[%s618 + $0x78] sm:$0xf]
        %v1055 = vld [vmem:[%s618 + $0x7c] sm:$0xf]
        %v1056 = vld [vmem:[%s716] sm:$0x1]
        %v1057 = vld [vmem:[#allocation10] sm:$0xf]
        %v1058 = vld [vmem:[#allocation10 + $0x4] sm:$0xf]
        %v1059 = vld [vmem:[#allocation10 + $0x8] sm:$0xf]
        %v1060 = vld [vmem:[#allocation10 + $0xc] sm:$0xf]
        %v1061 = vld [vmem:[#allocation10 + $0x10] sm:$0xf]
        %v1062 = vld [vmem:[#allocation10 + $0x14] sm:$0xf]
        %v1063 = vld [vmem:[#allocation10 + $0x18] sm:$0xf]
        %v1064 = vld [vmem:[#allocation10 + $0x1c] sm:$0xf]
        %v1065 = vld [vmem:[#allocation10 + $0x20] sm:$0xf]
        %v1066 = vld [vmem:[#allocation10 + $0x24] sm:$0xf]
        %v1067 = vld [vmem:[#allocation10 + $0x28] sm:$0xf]
        %v1068 = vld [vmem:[#allocation10 + $0x2c] sm:$0xf]
        %v1069 = vld [vmem:[#allocation10 + $0x30] sm:$0xf]
        %v1070 = vld [vmem:[#allocation10 + $0x34] sm:$0xf]
        %v1071 = vld [vmem:[#allocation10 + $0x38] sm:$0xf]
        %v1072 = vld [vmem:[#allocation10 + $0x3c] sm:$0xf]
        %v1073 = vld [vmem:[#allocation10 + $0x40] sm:$0xf]
        %v1074 = vld [vmem:[#allocation10 + $0x44] sm:$0xf]
        %v1075 = vld [vmem:[#allocation10 + $0x48] sm:$0xf]
        %v1076 = vld [vmem:[#allocation10 + $0x4c] sm:$0xf]
        %v1077 = vld [vmem:[#allocation10 + $0x50] sm:$0xf]
        %v1078 = vld [vmem:[#allocation10 + $0x54] sm:$0xf]
        %v1079 = vld [vmem:[#allocation10 + $0x58] sm:$0xf]
        %v1080 = vld [vmem:[#allocation10 + $0x5c] sm:$0xf]
        %v1081 = vld [vmem:[#allocation10 + $0x60] sm:$0xf]
        %v1082 = vld [vmem:[#allocation10 + $0x64] sm:$0xf]
        %v1083 = vld [vmem:[#allocation10 + $0x68] sm:$0xf]
        %v1084 = vld [vmem:[#allocation10 + $0x6c] sm:$0xf]
        %v1085 = vld [vmem:[#allocation10 + $0x70] sm:$0xf]
        %v1086 = vld [vmem:[#allocation10 + $0x74] sm:$0xf]
        %v1087 = vld [vmem:[#allocation10 + $0x78] sm:$0xf]
        %v1088 = vld [vmem:[#allocation10 + $0x7c] sm:$0xf]
        %v1089 = vld [vmem:[%s8] sm:$0x1]
        %v1090 = vpack.c.bf16 %v1020, %v1020
        %v1091 = vpack.c.bf16 %v1021, %v1021
        %v1093 = vlaneseq
        %v1094 = vshrl.u32 %v1093, 7
        %v1095 = vsub.s32 0, %v1094
        %v1096 = vrot.slane %v1056, %v1095
        %v1130 = vunpack.c.l.b16 %v1024
        %v1131 = vunpack.c.l.b16 %v1025
        %v1132 = vunpack.c.l.b16 %v1026
        %v1133 = vunpack.c.l.b16 %v1027
        %v1134 = vunpack.c.l.b16 %v1028
        %v1135 = vunpack.c.l.b16 %v1029
        %v1136 = vunpack.c.l.b16 %v1030
        %v1137 = vunpack.c.l.b16 %v1031
        %v1138 = vunpack.c.l.b16 %v1032
        %v1139 = vunpack.c.l.b16 %v1033
        %v1140 = vunpack.c.l.b16 %v1034
        %v1141 = vunpack.c.l.b16 %v1035
        %v1142 = vunpack.c.l.b16 %v1036
        %v1143 = vunpack.c.l.b16 %v1037
        %v1144 = vunpack.c.l.b16 %v1038
        %v1145 = vunpack.c.l.b16 %v1039
        %v1146 = vunpack.c.l.b16 %v1040
        %v1147 = vunpack.c.l.b16 %v1041
        %v1148 = vunpack.c.l.b16 %v1042
        %v1149 = vunpack.c.l.b16 %v1043
        %v1150 = vunpack.c.l.b16 %v1044
        %v1151 = vunpack.c.l.b16 %v1045
        %v1152 = vunpack.c.l.b16 %v1046
        %v1153 = vunpack.c.l.b16 %v1047
        %v1154 = vunpack.c.l.b16 %v1048
        %v1155 = vunpack.c.l.b16 %v1049
        %v1156 = vunpack.c.l.b16 %v1050
        %v1157 = vunpack.c.l.b16 %v1051
        %v1158 = vunpack.c.l.b16 %v1052
        %v1159 = vunpack.c.l.b16 %v1053
        %v1160 = vunpack.c.l.b16 %v1054
        %v1161 = vunpack.c.l.b16 %v1055
        %v1162 = vpack.c.b16 %v1131, %v1130
        %v1163 = vpack.c.b16 %v1133, %v1132
        %v1164 = vpack.c.b16 %v1135, %v1134
        %v1165 = vpack.c.b16 %v1137, %v1136
        %v1166 = vpack.c.b16 %v1139, %v1138
        %v1167 = vpack.c.b16 %v1141, %v1140
        %v1168 = vpack.c.b16 %v1143, %v1142
        %v1169 = vpack.c.b16 %v1145, %v1144
        %v1170 = vpack.c.b16 %v1147, %v1146
        %v1171 = vpack.c.b16 %v1149, %v1148
        %v1172 = vpack.c.b16 %v1151, %v1150
        %v1173 = vpack.c.b16 %v1153, %v1152
        %v1174 = vpack.c.b16 %v1155, %v1154
        %v1175 = vpack.c.b16 %v1157, %v1156
        %v1176 = vpack.c.b16 %v1159, %v1158
        %v1177 = vpack.c.b16 %v1161, %v1160
        %1194 = vmatprep.subr.bf16.mxu0 0
        %1195 = vmatpush1.bf16.msra.mxu0 %v1162
        %1196 = vmatprep.subr.bf16.mxu0 0
        %1197 = vmatpush1.bf16.msra.mxu0 %v1163
        %1198 = vmatprep.subr.bf16.mxu0 0
        %1199 = vmatpush1.bf16.msra.mxu0 %v1164
        %1200 = vmatprep.subr.bf16.mxu0 0
        %1201 = vmatpush1.bf16.msra.mxu0 %v1165
        %1202 = vmatprep.subr.bf16.mxu0 0
        %1203 = vmatpush1.bf16.msra.mxu0 %v1166
        %1204 = vmatprep.subr.bf16.mxu0 0
        %1205 = vmatpush1.bf16.msra.mxu0 %v1167
        %1206 = vmatprep.subr.bf16.mxu0 0
        %1207 = vmatpush1.bf16.msra.mxu0 %v1168
        %1208 = vmatprep.subr.bf16.mxu0 0
        %1209 = vmatpush1.bf16.msra.mxu0 %v1169
        %1210 = vmatprep.subr.bf16.mxu0 0
        %1211 = vmatpush1.bf16.msra.mxu0 %v1170
        %1212 = vmatprep.subr.bf16.mxu0 0
        %1213 = vmatpush1.bf16.msra.mxu0 %v1171
        %1214 = vmatprep.subr.bf16.mxu0 0
        %1215 = vmatpush1.bf16.msra.mxu0 %v1172
        %1216 = vmatprep.subr.bf16.mxu0 0
        %1217 = vmatpush1.bf16.msra.mxu0 %v1173
        %1218 = vmatprep.subr.bf16.mxu0 0
        %1219 = vmatpush1.bf16.msra.mxu0 %v1174
        %1220 = vmatprep.subr.bf16.mxu0 0
        %1221 = vmatpush1.bf16.msra.mxu0 %v1175
        %1222 = vmatprep.subr.bf16.mxu0 0
        %1223 = vmatpush1.bf16.msra.mxu0 %v1176
        %1224 = vmatprep.subr.bf16.mxu0 0
        %1225 = vmatpush1.bf16.msra.mxu0 %v1177
        %1226 = vmatprep.mubr.bf16.mxu0 %v1091
        %1227 = vmatmul.mubr.bf16.gmra.mrb[0].mxu0 %v1090
        %v1228 = vpop.f32.mrb[0].mxu0
        %v1229 = vadd.f32 %v1096, %v1228
        %v1230 = vpop.f32.mrb[0].mxu0
        %v1231 = vpop.f32.mrb[0].mxu0
        %v1232 = vpop.f32.mrb[0].mxu0
        %1233 = vdwg.mxu0
        %v1234 = vpack.c.bf16 %v1022, %v1022
        %v1235 = vpack.c.bf16 %v1023, %v1023
        %v1237 = vlaneseq
        %v1238 = vshrl.u32 %v1237, 7
        %v1239 = vsub.s32 0, %v1238
        %v1240 = vrot.slane %v1089, %v1239
        %v1274 = vunpack.c.l.b16 %v1057
        %v1275 = vunpack.c.l.b16 %v1058
        %v1276 = vunpack.c.l.b16 %v1059
        %v1277 = vunpack.c.l.b16 %v1060
        %v1278 = vunpack.c.l.b16 %v1061
        %v1279 = vunpack.c.l.b16 %v1062
        %v1280 = vunpack.c.l.b16 %v1063
        %v1281 = vunpack.c.l.b16 %v1064
        %v1282 = vunpack.c.l.b16 %v1065
        %v1283 = vunpack.c.l.b16 %v1066
        %v1284 = vunpack.c.l.b16 %v1067
        %v1285 = vunpack.c.l.b16 %v1068
        %v1286 = vunpack.c.l.b16 %v1069
        %v1287 = vunpack.c.l.b16 %v1070
        %v1288 = vunpack.c.l.b16 %v1071
        %v1289 = vunpack.c.l.b16 %v1072
        %v1290 = vunpack.c.l.b16 %v1073
        %v1291 = vunpack.c.l.b16 %v1074
        %v1292 = vunpack.c.l.b16 %v1075
        %v1293 = vunpack.c.l.b16 %v1076
        %v1294 = vunpack.c.l.b16 %v1077
        %v1295 = vunpack.c.l.b16 %v1078
        %v1296 = vunpack.c.l.b16 %v1079
        %v1297 = vunpack.c.l.b16 %v1080
        %v1298 = vunpack.c.l.b16 %v1081
        %v1299 = vunpack.c.l.b16 %v1082
        %v1300 = vunpack.c.l.b16 %v1083
        %v1301 = vunpack.c.l.b16 %v1084
        %v1302 = vunpack.c.l.b16 %v1085
        %v1303 = vunpack.c.l.b16 %v1086
        %v1304 = vunpack.c.l.b16 %v1087
        %v1305 = vunpack.c.l.b16 %v1088
        %v1306 = vpack.c.b16 %v1275, %v1274
        %v1307 = vpack.c.b16 %v1277, %v1276
        %v1308 = vpack.c.b16 %v1279, %v1278
        %v1309 = vpack.c.b16 %v1281, %v1280
        %v1310 = vpack.c.b16 %v1283, %v1282
        %v1311 = vpack.c.b16 %v1285, %v1284
        %v1312 = vpack.c.b16 %v1287, %v1286
        %v1313 = vpack.c.b16 %v1289, %v1288
        %v1314 = vpack.c.b16 %v1291, %v1290
        %v1315 = vpack.c.b16 %v1293, %v1292
        %v1316 = vpack.c.b16 %v1295, %v1294
        %v1317 = vpack.c.b16 %v1297, %v1296
        %v1318 = vpack.c.b16 %v1299, %v1298
        %v1319 = vpack.c.b16 %v1301, %v1300
        %v1320 = vpack.c.b16 %v1303, %v1302
        %v1321 = vpack.c.b16 %v1305, %v1304
        %1338 = vmatprep.subr.bf16.mxu0 0
        %1339 = vmatpush1.bf16.msra.mxu0 %v1306
        %1340 = vmatprep.subr.bf16.mxu0 0
        %1341 = vmatpush1.bf16.msra.mxu0 %v1307
        %1342 = vmatprep.subr.bf16.mxu0 0
        %1343 = vmatpush1.bf16.msra.mxu0 %v1308
        %1344 = vmatprep.subr.bf16.mxu0 0
        %1345 = vmatpush1.bf16.msra.mxu0 %v1309
        %1346 = vmatprep.subr.bf16.mxu0 0
        %1347 = vmatpush1.bf16.msra.mxu0 %v1310
        %1348 = vmatprep.subr.bf16.mxu0 0
        %1349 = vmatpush1.bf16.msra.mxu0 %v1311
        %1350 = vmatprep.subr.bf16.mxu0 0
        %1351 = vmatpush1.bf16.msra.mxu0 %v1312
        %1352 = vmatprep.subr.bf16.mxu0 0
        %1353 = vmatpush1.bf16.msra.mxu0 %v1313
        %1354 = vmatprep.subr.bf16.mxu0 0
        %1355 = vmatpush1.bf16.msra.mxu0 %v1314
        %1356 = vmatprep.subr.bf16.mxu0 0
        %1357 = vmatpush1.bf16.msra.mxu0 %v1315
        %1358 = vmatprep.subr.bf16.mxu0 0
        %1359 = vmatpush1.bf16.msra.mxu0 %v1316
        %1360 = vmatprep.subr.bf16.mxu0 0
        %1361 = vmatpush1.bf16.msra.mxu0 %v1317
        %1362 = vmatprep.subr.bf16.mxu0 0
        %1363 = vmatpush1.bf16.msra.mxu0 %v1318
        %1364 = vmatprep.subr.bf16.mxu0 0
        %1365 = vmatpush1.bf16.msra.mxu0 %v1319
        %1366 = vmatprep.subr.bf16.mxu0 0
        %1367 = vmatpush1.bf16.msra.mxu0 %v1320
        %1368 = vmatprep.subr.bf16.mxu0 0
        %1369 = vmatpush1.bf16.msra.mxu0 %v1321
        %1370 = vmatprep.mubr.bf16.mxu0 %v1235
        %1371 = vmatmul.mubr.bf16.gmra.mrb[0].mxu0 %v1234
        %v1372 = vpop.f32.mrb[0].mxu0
        %v1373 = vadd.f32 %v1240, %v1372
        %v1374 = vpop.f32.mrb[0].mxu0
        %v1375 = vpop.f32.mrb[0].mxu0
        %v1376 = vpop.f32.mrb[0].mxu0
        %1377 = vdwg.mxu0
        %v1378 = vmax.f32 %v1229, 0.0
        %v1379 = vmax.f32 %v1373, 0.0
        %v1380 = vld [vmem:[%s631] sm:$0xf]
        %v1381 = vld [vmem:[%s631 + $0x4] sm:$0xf]
        %v1382 = vld [vmem:[%s631 + $0x8] sm:$0xf]
        %v1383 = vld [vmem:[%s631 + $0xc] sm:$0xf]
        %v1384 = vld [vmem:[%s631 + $0x10] sm:$0xf]
        %v1385 = vld [vmem:[%s631 + $0x14] sm:$0xf]
        %v1386 = vld [vmem:[%s631 + $0x18] sm:$0xf]
        %v1387 = vld [vmem:[%s631 + $0x1c] sm:$0xf]
        %v1388 = vld [vmem:[%s631 + $0x20] sm:$0xf]
        %v1389 = vld [vmem:[%s631 + $0x24] sm:$0xf]
        %v1390 = vld [vmem:[%s631 + $0x28] sm:$0xf]
        %v1391 = vld [vmem:[%s631 + $0x2c] sm:$0xf]
        %v1392 = vld [vmem:[%s631 + $0x30] sm:$0xf]
        %v1393 = vld [vmem:[%s631 + $0x34] sm:$0xf]
        %v1394 = vld [vmem:[%s631 + $0x38] sm:$0xf]
        %v1395 = vld [vmem:[%s631 + $0x3c] sm:$0xf]
        %v1396 = vld [vmem:[%s719] sm:$0x1]
        %v1397 = vld [vmem:[#allocation13] sm:$0xf]
        %v1398 = vld [vmem:[#allocation13 + $0x4] sm:$0xf]
        %v1399 = vld [vmem:[#allocation13 + $0x8] sm:$0xf]
        %v1400 = vld [vmem:[#allocation13 + $0xc] sm:$0xf]
        %v1401 = vld [vmem:[#allocation13 + $0x10] sm:$0xf]
        %v1402 = vld [vmem:[#allocation13 + $0x14] sm:$0xf]
        %v1403 = vld [vmem:[#allocation13 + $0x18] sm:$0xf]
        %v1404 = vld [vmem:[#allocation13 + $0x1c] sm:$0xf]
        %v1405 = vld [vmem:[#allocation13 + $0x20] sm:$0xf]
        %v1406 = vld [vmem:[#allocation13 + $0x24] sm:$0xf]
        %v1407 = vld [vmem:[#allocation13 + $0x28] sm:$0xf]
        %v1408 = vld [vmem:[#allocation13 + $0x2c] sm:$0xf]
        %v1409 = vld [vmem:[#allocation13 + $0x30] sm:$0xf]
        %v1410 = vld [vmem:[#allocation13 + $0x34] sm:$0xf]
        %v1411 = vld [vmem:[#allocation13 + $0x38] sm:$0xf]
        %v1412 = vld [vmem:[#allocation13 + $0x3c] sm:$0xf]
        %v1413 = vld [vmem:[%s12] sm:$0x1]
        %v1414 = vpack.c.bf16 %v1378, %v1378
        %v1416 = vlaneseq
        %v1417 = vshrl.u32 %v1416, 7
        %v1418 = vsub.s32 0, %v1417
        %v1419 = vrot.slane %v1396, %v1418
        %v1437 = vunpack.c.l.b16 %v1380
        %v1438 = vunpack.c.l.b16 %v1381
        %v1439 = vunpack.c.l.b16 %v1382
        %v1440 = vunpack.c.l.b16 %v1383
        %v1441 = vunpack.c.l.b16 %v1384
        %v1442 = vunpack.c.l.b16 %v1385
        %v1443 = vunpack.c.l.b16 %v1386
        %v1444 = vunpack.c.l.b16 %v1387
        %v1445 = vunpack.c.l.b16 %v1388
        %v1446 = vunpack.c.l.b16 %v1389
        %v1447 = vunpack.c.l.b16 %v1390
        %v1448 = vunpack.c.l.b16 %v1391
        %v1449 = vunpack.c.l.b16 %v1392
        %v1450 = vunpack.c.l.b16 %v1393
        %v1451 = vunpack.c.l.b16 %v1394
        %v1452 = vunpack.c.l.b16 %v1395
        %v1453 = vpack.c.b16 %v1438, %v1437
        %v1454 = vpack.c.b16 %v1440, %v1439
        %v1455 = vpack.c.b16 %v1442, %v1441
        %v1456 = vpack.c.b16 %v1444, %v1443
        %v1457 = vpack.c.b16 %v1446, %v1445
        %v1458 = vpack.c.b16 %v1448, %v1447
        %v1459 = vpack.c.b16 %v1450, %v1449
        %v1460 = vpack.c.b16 %v1452, %v1451
        %1469 = vmatprep.subr.bf16.mxu0 0
        %1470 = vmatpush1.bf16.msra.mxu0 %v1453
        %1471 = vmatprep.subr.bf16.mxu0 0
        %1472 = vmatpush1.bf16.msra.mxu0 %v1454
        %1473 = vmatprep.subr.bf16.mxu0 0
        %1474 = vmatpush1.bf16.msra.mxu0 %v1455
        %1475 = vmatprep.subr.bf16.mxu0 0
        %1476 = vmatpush1.bf16.msra.mxu0 %v1456
        %1477 = vmatprep.subr.bf16.mxu0 0
        %1478 = vmatpush1.bf16.msra.mxu0 %v1457
        %1479 = vmatprep.subr.bf16.mxu0 0
        %1480 = vmatpush1.bf16.msra.mxu0 %v1458
        %1481 = vmatprep.subr.bf16.mxu0 0
        %1482 = vmatpush1.bf16.msra.mxu0 %v1459
        %1483 = vmatprep.subr.bf16.mxu0 0
        %1484 = vmatpush1.bf16.msra.mxu0 %v1460
        %1485 = vmatprep.subr.bf16.mxu0 0
        %1486 = vmatpush1.bf16.msra.mxu0 0
        %1487 = vmatprep.subr.bf16.mxu0 0
        %1488 = vmatpush1.bf16.msra.mxu0 0
        %1489 = vmatprep.subr.bf16.mxu0 0
        %1490 = vmatpush1.bf16.msra.mxu0 0
        %1491 = vmatprep.subr.bf16.mxu0 0
        %1492 = vmatpush1.bf16.msra.mxu0 0
        %1493 = vmatprep.subr.bf16.mxu0 0
        %1494 = vmatpush1.bf16.msra.mxu0 0
        %1495 = vmatprep.subr.bf16.mxu0 0
        %1496 = vmatpush1.bf16.msra.mxu0 0
        %1497 = vmatprep.subr.bf16.mxu0 0
        %1498 = vmatpush1.bf16.msra.mxu0 0
        %1499 = vmatprep.subr.bf16.mxu0 0
        %1500 = vmatpush1.bf16.msra.mxu0 0
        %1501 = vmatprep.mubr.bf16.mxu0 0
        %1502 = vmatmul.mubr.bf16.gmra.mrb[0].mxu0 %v1414
        %v1503 = vpop.f32.mrb[0].mxu0
        %v1504 = vadd.f32 %v1419, %v1503
        %v1505 = vpop.f32.mrb[0].mxu0
        %v1506 = vpop.f32.mrb[0].mxu0
        %v1507 = vpop.f32.mrb[0].mxu0
        %1508 = vdwg.mxu0
        %v1509 = vpack.c.bf16 %v1379, %v1379
        %v1511 = vlaneseq
        %v1512 = vshrl.u32 %v1511, 7
        %v1513 = vsub.s32 0, %v1512
        %v1514 = vrot.slane %v1413, %v1513
        %v1532 = vunpack.c.l.b16 %v1397
        %v1533 = vunpack.c.l.b16 %v1398
        %v1534 = vunpack.c.l.b16 %v1399
        %v1535 = vunpack.c.l.b16 %v1400
        %v1536 = vunpack.c.l.b16 %v1401
        %v1537 = vunpack.c.l.b16 %v1402
        %v1538 = vunpack.c.l.b16 %v1403
        %v1539 = vunpack.c.l.b16 %v1404
        %v1540 = vunpack.c.l.b16 %v1405
        %v1541 = vunpack.c.l.b16 %v1406
        %v1542 = vunpack.c.l.b16 %v1407
        %v1543 = vunpack.c.l.b16 %v1408
        %v1544 = vunpack.c.l.b16 %v1409
        %v1545 = vunpack.c.l.b16 %v1410
        %v1546 = vunpack.c.l.b16 %v1411
        %v1547 = vunpack.c.l.b16 %v1412
        %v1548 = vpack.c.b16 %v1533, %v1532
        %v1549 = vpack.c.b16 %v1535, %v1534
        %v1550 = vpack.c.b16 %v1537, %v1536
        %v1551 = vpack.c.b16 %v1539, %v1538
        %v1552 = vpack.c.b16 %v1541, %v1540
        %v1553 = vpack.c.b16 %v1543, %v1542
        %v1554 = vpack.c.b16 %v1545, %v1544
        %v1555 = vpack.c.b16 %v1547, %v1546
        %1564 = vmatprep.subr.bf16.mxu0 0
        %1565 = vmatpush1.bf16.msra.mxu0 %v1548
        %1566 = vmatprep.subr.bf16.mxu0 0
        %1567 = vmatpush1.bf16.msra.mxu0 %v1549
        %1568 = vmatprep.subr.bf16.mxu0 0
        %1569 = vmatpush1.bf16.msra.mxu0 %v1550
        %1570 = vmatprep.subr.bf16.mxu0 0
        %1571 = vmatpush1.bf16.msra.mxu0 %v1551
        %1572 = vmatprep.subr.bf16.mxu0 0
        %1573 = vmatpush1.bf16.msra.mxu0 %v1552
        %1574 = vmatprep.subr.bf16.mxu0 0
        %1575 = vmatpush1.bf16.msra.mxu0 %v1553
        %1576 = vmatprep.subr.bf16.mxu0 0
        %1577 = vmatpush1.bf16.msra.mxu0 %v1554
        %1578 = vmatprep.subr.bf16.mxu0 0
        %1579 = vmatpush1.bf16.msra.mxu0 %v1555
        %1580 = vmatprep.subr.bf16.mxu0 0
        %1581 = vmatpush1.bf16.msra.mxu0 0
        %1582 = vmatprep.subr.bf16.mxu0 0
        %1583 = vmatpush1.bf16.msra.mxu0 0
        %1584 = vmatprep.subr.bf16.mxu0 0
        %1585 = vmatpush1.bf16.msra.mxu0 0
        %1586 = vmatprep.subr.bf16.mxu0 0
        %1587 = vmatpush1.bf16.msra.mxu0 0
        %1588 = vmatprep.subr.bf16.mxu0 0
        %1589 = vmatpush1.bf16.msra.mxu0 0
        %1590 = vmatprep.subr.bf16.mxu0 0
        %1591 = vmatpush1.bf16.msra.mxu0 0
        %1592 = vmatprep.subr.bf16.mxu0 0
        %1593 = vmatpush1.bf16.msra.mxu0 0
        %1594 = vmatprep.subr.bf16.mxu0 0
        %1595 = vmatpush1.bf16.msra.mxu0 0
        %1596 = vmatprep.mubr.bf16.mxu0 0
        %1597 = vmatmul.mubr.bf16.gmra.mrb[0].mxu0 %v1509
        %v1598 = vpop.f32.mrb[0].mxu0
        %v1599 = vadd.f32 %v1514, %v1598
        %v1600 = vpop.f32.mrb[0].mxu0
        %v1601 = vpop.f32.mrb[0].mxu0
        %v1602 = vpop.f32.mrb[0].mxu0
        %1603 = vdwg.mxu0
        %1604 = vst [vmem:[%s702] sm:$0xff] %v1504
        %1605 = vst [vmem:[%s709] sm:$0xff] %v1599
        %s1606 = sand.u32 %s376, 1
        %s1607 = scalar_lea.sflag [#allocation4], %s1606
        %s1608 = sand.u32 %s376, 1
        %s1609 = smul.addr %s1608, 8
        %s1610 = scalar_lea.vmem [#allocation14], %s1609
        %s1611 = sand.u32 %s404, 1
        %s1612 = scalar_lea.sflag [#allocation16], %s1611
        %s1613 = sand.u32 %s404, 1
        %s1614 = smul.addr %s1613, 8
        %s1615 = scalar_lea.vmem [#allocation15], %s1614
        // Predicated region
        $region101: #{tpu_custom_call.1} parent=71 // pred_check
          %p1616 = pneg %p386
        $region102: #{tpu_custom_call.1} parent=71 // pred_check_branch
          %1618 = sbr.rel (%p1616) target = $region104
        $region103: #{tpu_custom_call.1} parent=71 // pred_region
          %s1620 = ssub.s32 128, 128
          %1621 = vsyncadd %s1607, %s1620
          %s1622 = sadd.s32 %s49, %s48
          %s1623 = smul.addr %s1622, 128
          %s1624 = scalar_lea.hbm %s13, %s1623
          %s1626 = sshll.u32 %s1610, 4
          %s1627 = int_to_ptr.vmem [resolvable:$true] %s1626
          %1629 = dma.vmem_to_hbm [thread:$0]  %s1627, 128, %s1624, %s1607
        $region104: #{tpu_custom_call.1} parent=71 // pred_fallthru
          _
        // Predicated region
        $region105: #{tpu_custom_call.1} parent=71 // pred_check
          %p1630 = pneg %p414
        $region106: #{tpu_custom_call.1} parent=71 // pred_check_branch
          %1632 = sbr.rel (%p1630) target = $region108
        $region107: #{tpu_custom_call.1} parent=71 // pred_region
          %s1634 = ssub.s32 128, 128
          %1635 = vsyncadd %s1612, %s1634
          %s1636 = sadd.s32 %s49, %s48
          %s1637 = smul.addr %s1636, 128
          %s1638 = scalar_lea.hbm %s14, %s1637
          %s1640 = sshll.u32 %s1615, 4
          %s1641 = int_to_ptr.vmem [resolvable:$true] %s1640
          %1643 = dma.vmem_to_hbm [thread:$0]  %s1641, 128, %s1638, %s1612
        $region108: #{tpu_custom_call.1} parent=71 // pred_fallthru
          _
      $region72: #{tpu_custom_call.1} parent=5 // pred_fallthru
        _
      %p1644 = scmp.le.s32.totalorder 2, %s39
      // Predicated region
      $region109: #{tpu_custom_call.1} parent=5 // pred_check
        %p1645 = pneg %p1644
      $region110: #{tpu_custom_call.1} parent=5 // pred_check_branch
        %1647 = sbr.rel (%p1645) target = $region112
      $region111: #{tpu_custom_call.1} parent=5 // pred_region
        %s1648 = ssub.s32 %s39, 2
        // Predicated region
        $region113: #{tpu_custom_call.1} parent=111 // pred_check
          %p1649 = pneg %p392
        $region114: #{tpu_custom_call.1} parent=111 // pred_check_branch
          %1651 = sbr.rel (%p1649) target = $region116
        $region115: #{tpu_custom_call.1} parent=111 // pred_region
          %s1652 = sand.u32 %s377, 1
          %s1653 = scalar_lea.sflag [#allocation4], %s1652
          %s1654 = sand.u32 %s377, 1
          %s1655 = smul.addr %s1654, 8
          %s1656 = scalar_lea.vmem [#allocation14], %s1655
          %1657 = dma.done %s1653, 128
        $region116: #{tpu_custom_call.1} parent=111 // pred_fallthru
          _
        // Predicated region
        $region117: #{tpu_custom_call.1} parent=111 // pred_check
          %p1658 = pneg %p420
        $region118: #{tpu_custom_call.1} parent=111 // pred_check_branch
          %1660 = sbr.rel (%p1658) target = $region120
        $region119: #{tpu_custom_call.1} parent=111 // pred_region
          %s1661 = sand.u32 %s405, 1
          %s1662 = scalar_lea.sflag [#allocation16], %s1661
          %s1663 = sand.u32 %s405, 1
          %s1664 = smul.addr %s1663, 8
          %s1665 = scalar_lea.vmem [#allocation15], %s1664
          %1666 = dma.done %s1662, 128
        $region120: #{tpu_custom_call.1} parent=111 // pred_fallthru
          _
      $region112: #{tpu_custom_call.1} parent=5 // pred_fallthru
        _
    $region6: #{tpu_custom_call.1} parent=1 // loop_footer
      %s43 = sadd.s32 1, %s39
    $region7: #{tpu_custom_call.1} parent=1 // loop_footer_branch
      %38 = sbr.rel target = $region3
    $region8: #{tpu_custom_call.1} parent=1 // loop_exit
      _
    %1667 = vsyncpa [#allocation3], 1
    %s1668 = scalar_lea.sflag [#allocation3], 1
    %1669 = vsyncpa %s1668, 1
    %1670 = vsyncpa [#allocation6], 1
    %s1671 = scalar_lea.sflag [#allocation6], 1
    %1672 = vsyncpa %s1671, 1
    %1673 = vsyncpa [#allocation9], 1
    %s1674 = scalar_lea.sflag [#allocation9], 1
    %1675 = vsyncpa %s1674, 1
    %1676 = vsyncpa [#allocation12], 1
    %s1677 = scalar_lea.sflag [#allocation12], 1
    %1678 = vsyncpa %s1677, 1
    %1679 = vsyncpa [#allocation4], 1
    %s1680 = scalar_lea.sflag [#allocation4], 1
    %1681 = vsyncpa %s1680, 1
    %1682 = vsyncpa [#allocation16], 1
    %s1683 = scalar_lea.sflag [#allocation16], 1
    %1684 = vsyncpa %s1683, 1

</llo_original>
